<compile_context>
chip_gen: v6e
topology: v6e:2x2x1
jax: 0.10.0
libtpu: 0.0.40
codegen_flags: <defaults>
</compile_context>

<pallas_src>
import functools

import jax
import jax.numpy as jnp
from jax import lax
from jax.experimental import pallas as pl
from jax.experimental.pallas import tpu as pltpu

BN_EPS = 1e-3                      # eps=0.001 in the PyTorch module


# ---------------------------------------------------------------------------
# generation-aware budgets + tile-size helpers
# ---------------------------------------------------------------------------
def _vmem_caps():
    """128 MiB-VMEM parts (v5e/v6e): big tiles + high scoped limit.
    64 MiB parts (v7x): conservative caps."""
    try:
        cap = int(pltpu.get_tpu_info().vmem_capacity_bytes)
    except Exception:
        cap = 64 * 1024 * 1024
    if cap >= 100 * 1024 * 1024:          # v5e / v6e (128 MiB VMEM)
        return dict(vmem_limit=64 << 20, chan_tile_bytes=16 << 20,
                    spat_tile_bytes=16 << 20)
    return dict(vmem_limit=32 << 20, chan_tile_bytes=4 << 20,   # v7x (64 MiB VMEM)
                spat_tile_bytes=8 << 20)


def _pick_channel_tile(cin, hp, wp, ho, wo, budget_bytes):
    """Channels per depthwise block; bounds the (input + output) f32 blocks
    (double-buffered) to the generation-specific budget."""
    per_chan = 4 * (hp * wp + ho * wo) * 2
    budget = max(1, budget_bytes // per_chan)
    if budget >= cin:
        return cin
    ct = (budget // 8) * 8
    while ct >= 8:
        if cin % ct == 0:
            return ct
        ct -= 8
    # TODO(synk): row-tile Pass A (halo via element-offset windows) when a single
    # channel group's padded image is itself too large for VMEM.
    return cin


def _pick_spatial_tile(s_pad, bytes_per_col, budget_bytes, min_tiles=1):
    """s_pad is a multiple of 128.  Largest 128-multiple divisor of s_pad whose
    double-buffered (in + out) blocks stay under budget, with at least `min_tiles`
    spatial grid steps so both v7x TensorCores get work."""
    min_tiles = max(1, min(min_tiles, s_pad // 128))
    max_cols = max(128, ((budget_bytes // max(2 * bytes_per_col, 1)) // 128) * 128)
    t = min(s_pad, max_cols, s_pad // min_tiles)
    t = max(128, (t // 128) * 128)
    while s_pad % t != 0:
        t -= 128
    return t


# ---------------------------------------------------------------------------
# Pass A: depthwise kxk conv (groups = Cin) + per-channel spatial sums (SE pool).
# Grid: (batch, channel groups), both parallel.  Strip-mined over 8 output rows so
# the tap accumulator stays vreg-resident.
# ---------------------------------------------------------------------------
def _depthwise_kernel(xpad_ref, wdw_ref, y1_ref, psum_ref, *, k, stride, Ho, Wo,
                      row_tile):
    xp = xpad_ref[0]                            # (CT, Hp, Wp) f32
    wdw = wdw_ref[...]                          # (CT, k, k)  f32
    ct = wdw.shape[0]
    w_span = (Wo - 1) * stride + 1

    psum = jnp.zeros((ct, 1), jnp.float32)
    for h0 in range(0, Ho, row_tile):           # static strip loop (Ho known at trace)
        rows = min(row_tile, Ho - h0)
        band_h = (rows - 1) * stride + k
        band = xp[:, h0 * stride:h0 * stride + band_h, :]          # (CT, band_h, Wp)

        # Tap accumulation for this strip lives in vregs; W is decimated once at the
        # end for stride > 1 instead of k*k strided lane slices.
        acc = jnp.zeros((ct, rows, w_span), jnp.float32)
        for ky in range(k):
            h_end = ky + (rows - 1) * stride + 1
            for kx in range(k):
                patch = band[:, ky:h_end:stride, kx:kx + w_span]
                acc = acc + patch * wdw[:, ky:ky + 1, kx:kx + 1]
        if stride > 1:
            acc = acc[:, :, ::stride]

        # TODO(synk): lane-dense (CT, rows*Wo) store (needs a minor-dim-collapsing
        # reshape in-kernel); pltpu.roll-based kx shifts for the tap loads.
        y1_ref[0, :, h0:h0 + rows, :] = acc
        row_sums = jnp.sum(acc, axis=2)                             # (CT, rows)
        psum = psum + jnp.sum(row_sums, axis=1, keepdims=True)      # (CT, 1)

    psum_ref[0] = psum


# ---------------------------------------------------------------------------
# Fused Pass B: SE channel scaling + 1x1 pointwise conv + folded BN scale/shift +
# PReLU on a lane-dense (C, spatial-tile) slab.  Writes the FINAL output directly
# (no z round trip).  Grid: (batch, spatial tiles), both parallel.
# ---------------------------------------------------------------------------
def _fused_se_pw_bn_prelu_kernel(y1_ref, gate_ref, wpw_ref, scale_ref, shift_ref,
                                 alpha_ref, out_ref):
    y = y1_ref[0] * gate_ref[0]                 # (Cin, St) * (Cin, 1)
    wpw = wpw_ref[...]                          # (nOut, Cin)
    cin = y.shape[0]

    if cin > 16:
        # Enough contraction depth for the MXU: bf16 inputs, f32 accumulation
        # (BN re-normalizes, so the precision loss is benign).
        z = jnp.dot(wpw.astype(jnp.bfloat16), y.astype(jnp.bfloat16),
                    preferred_element_type=jnp.float32)             # (nOut, St)
    else:
        # Tiny channel count: VPU outer-product multiply-accumulate.
        z = jnp.zeros((wpw.shape[0], y.shape[1]), jnp.float32)
        for c in range(cin):
            z = z + wpw[:, c:c + 1] * y[c:c + 1, :]

    zh = z * scale_ref[...] + shift_ref[...]                        # folded BN
    out_ref[0] = jnp.where(zh >= 0, zh, alpha_ref[...] * zh)        # PReLU, lane-dense


# ---------------------------------------------------------------------------
# Wrapper: layout plumbing, SE gate MLP, analytic BN statistics, pallas_call glue.
# ---------------------------------------------------------------------------
def se_separable_cbr_forward(x_nchw, params, kSize=3, stride=1):
    B, Cin, H, W = x_nchw.shape
    nOut = params["w_pw"].shape[0]
    pad = (kSize - 1) // 2
    Hp, Wp = H + 2 * pad, W + 2 * pad
    Ho = (H + 2 * pad - kSize) // stride + 1
    Wo = (W + 2 * pad - kSize) // stride + 1
    S = Ho * Wo

    caps = _vmem_caps()

    x = x_nchw.astype(jnp.float32)
    xpad = jnp.pad(x, ((0, 0), (0, 0), (pad, pad), (pad, pad)))
    # TODO(synk): fold the 1-px halo into Pass A (boundary masking / element-offset
    # windows) to drop this extra HBM write+read of the input.

    # ---- Pass A: depthwise conv, channel-tiled, row-strip-mined --------------------
    CT = _pick_channel_tile(Cin, Hp, Wp, Ho, Wo, caps["chan_tile_bytes"])
    row_tile = 8 if Ho >= 8 else Ho
    kernel_a = functools.partial(_depthwise_kernel, k=kSize, stride=stride,
                                 Ho=Ho, Wo=Wo, row_tile=row_tile)
    # TODO(synk): add a row-tile grid axis (with halo) so small-B cases still feed
    # both v7x TensorCores.
    y1, psum = pl.pallas_call(
        kernel_a,
        grid=(B, Cin // CT),
        in_specs=[
            pl.BlockSpec((1, CT, Hp, Wp), lambda b, c: (b, c, 0, 0)),
            pl.BlockSpec((CT, kSize, kSize), lambda b, c: (c, 0, 0)),
        ],
        out_specs=[
            pl.BlockSpec((1, CT, Ho, Wo), lambda b, c: (b, c, 0, 0)),
            pl.BlockSpec((1, CT, 1), lambda b, c: (b, c, 0)),
        ],
        out_shape=[
            jax.ShapeDtypeStruct((B, Cin, Ho, Wo), jnp.float32),
            jax.ShapeDtypeStruct((B, Cin, 1), jnp.float32),
        ],
        compiler_params=pltpu.CompilerParams(
            dimension_semantics=("parallel", "parallel"),
            vmem_limit_bytes=caps["vmem_limit"]),
    )(xpad, params["w_dw"].astype(jnp.float32))

    # ---- SE gate: tiny (B, Cin) MLP, plain JAX -------------------------------------
    s_pool = psum[:, :, 0] * (1.0 / float(S))              # global average pool
    h = s_pool @ params["w1"].T + params["b1"]
    h = jnp.where(h >= 0, h, params["a1"] * h)
    g = h @ params["w2"].T + params["b2"]
    g = jnp.where(g >= 0, g, params["a2"] * g)             # (B, Cin)
    gate = g[:, :, None].astype(jnp.float32)               # (B, Cin, 1)

    # Free HBM reshape (merges minor dims): lane axis = flattened spatial axis.
    y1_flat = y1.reshape(B, Cin, S)

    # ---- Analytic BatchNorm statistics (training mode, biased variance) ------------
    #   sum_s z[b,o]   = sum_c Wg[b,o,c] * psum[b,c]
    #   sum_s z^2[b,o] = sum_{c,d} Wg[b,o,c] * G[b,c,d] * Wg[b,o,d]
    # with Wg = W_pw * gate and G the spatial Gram of y1.  This removes the z HBM
    # round trip entirely.
    # TODO(synk): emit G from Pass A when CT == Cin to skip this extra y1 read.
    wpw = params["w_pw"].astype(jnp.float32)
    gram = jnp.einsum("bcs,bds->bcd", y1_flat, y1_flat)    # (B, Cin, Cin), tiny
    wg = wpw[None, :, :] * g[:, None, :]                   # (B, nOut, Cin)
    zsum = jnp.einsum("boc,bc->bo", wg, psum[:, :, 0])     # (B, nOut)
    zsq = jnp.einsum("boc,bcd,bod->bo", wg, gram, wg)      # (B, nOut)
    n_elem = float(B * S)
    mean = jnp.sum(zsum, axis=0) / n_elem
    var = jnp.maximum(jnp.sum(zsq, axis=0) / n_elem - mean * mean, 0.0)
    inv = params["gamma"] / jnp.sqrt(var + BN_EPS)
    scale = inv.reshape(nOut, 1).astype(jnp.float32)
    shift = (params["beta"] - mean * inv).reshape(nOut, 1).astype(jnp.float32)
    alpha = params["alpha_out"].reshape(nOut, 1).astype(jnp.float32)

    # ---- Spatial padding so the lane axis is always a multiple of 128 --------------
    S_pad = S if S % 128 == 0 else ((S + 127) // 128) * 128
    if S_pad != S:
        y1_flat = jnp.pad(y1_flat, ((0, 0), (0, 0), (0, S_pad - S)))

    S_TILE = _pick_spatial_tile(S_pad, 4 * (Cin + nOut), caps["spat_tile_bytes"],
                                min_tiles=(1 if B >= 2 else 2))
    nT = S_pad // S_TILE

    # ---- Fused Pass B: SE scale + 1x1 conv + BN + PReLU -> final output ------------
    out_flat = pl.pallas_call(
        _fused_se_pw_bn_prelu_kernel,
        grid=(B, nT),
        in_specs=[
            pl.BlockSpec((1, Cin, S_TILE), lambda b, t: (b, 0, t)),
            pl.BlockSpec((1, Cin, 1), lambda b, t: (b, 0, 0)),
            pl.BlockSpec((nOut, Cin), lambda b, t: (0, 0)),
            pl.BlockSpec((nOut, 1), lambda b, t: (0, 0)),
            pl.BlockSpec((nOut, 1), lambda b, t: (0, 0)),
            pl.BlockSpec((nOut, 1), lambda b, t: (0, 0)),
        ],
        out_specs=pl.BlockSpec((1, nOut, S_TILE), lambda b, t: (b, 0, t)),
        out_shape=jax.ShapeDtypeStruct((B, nOut, S_pad), jnp.float32),
        compiler_params=pltpu.CompilerParams(
            dimension_semantics=("parallel", "parallel"),
            vmem_limit_bytes=caps["vmem_limit"]),
    )(y1_flat, gate, wpw, scale, shift, alpha)

    if S_pad != S:
        out_flat = out_flat[:, :, :S]
    # Free reshape (splits the minor dim) -> NCHW output.
    return out_flat.reshape(B, nOut, Ho, Wo)


# ---------------------------------------------------------------------------
# Deterministic parameter init (PyTorch-orientation shapes; divide=2.0, PReLU=0.25).
# ---------------------------------------------------------------------------
def init_params(key, nIn, nOut, kSize, divide=2.0):
    cmid = int(nIn / divide)
    ks = jax.random.split(key, 8)
    sc = 0.5
    return dict(
        w_dw=jax.random.normal(ks[0], (nIn, kSize, kSize), jnp.float32) * sc,   # dw conv
        w1=jax.random.normal(ks[1], (cmid, nIn), jnp.float32) * sc,             # Linear1
        b1=jax.random.normal(ks[2], (cmid,), jnp.float32) * sc,
        a1=jnp.full((cmid,), 0.25, jnp.float32),                                 # PReLU
        w2=jax.random.normal(ks[3], (nIn, cmid), jnp.float32) * sc,             # Linear2
        b2=jax.random.normal(ks[4], (nIn,), jnp.float32) * sc,
        a2=jnp.full((nIn,), 0.25, jnp.float32),
        w_pw=jax.random.normal(ks[5], (nOut, nIn), jnp.float32) * sc,           # 1x1 conv
        gamma=1.0 + 0.1 * jax.random.normal(ks[6], (nOut,), jnp.float32),
        beta=0.1 * jax.random.normal(ks[7], (nOut,), jnp.float32),
        alpha_out=jnp.full((nOut,), 0.25, jnp.float32),
    )


# ---------------------------------------------------------------------------
# Pure-JAX reference (mirrors the PyTorch forward, NCHW).
# ---------------------------------------------------------------------------
def reference(x, p, kSize, stride):
    B, Cin, H, W = x.shape
    pad = (kSize - 1) // 2
    w_dw = p["w_dw"][:, None, :, :]                      # (Cin,1,k,k)
    y1 = lax.conv_general_dilated(
        x, w_dw, (stride, stride), [(pad, pad), (pad, pad)],
        feature_group_count=Cin, dimension_numbers=("NCHW", "OIHW", "NCHW"))
    s = jnp.mean(y1, axis=(2, 3))
    h = s @ p["w1"].T + p["b1"]
    h = jnp.where(h >= 0, h, p["a1"] * h)
    g = h @ p["w2"].T + p["b2"]
    g = jnp.where(g >= 0, g, p["a2"] * g)
    y = y1 * g[:, :, None, None]
    z = jnp.einsum("bchw,oc->bohw", y, p["w_pw"])
    mean = jnp.mean(z, axis=(0, 2, 3), keepdims=True)
    var = jnp.mean((z - mean) ** 2, axis=(0, 2, 3), keepdims=True)
    zh = ((z - mean) / jnp.sqrt(var + BN_EPS) * p["gamma"].reshape(1, -1, 1, 1)
          + p["beta"].reshape(1, -1, 1, 1))
    return jnp.where(zh >= 0, zh, p["alpha_out"].reshape(1, -1, 1, 1) * zh)


if __name__ == "__main__":
    key = jax.random.PRNGKey(0)
    B, nIn, H, W = 2, 4, 16, 16
    nOut, kSize, stride = 8, 3, 1

    kx, kp = jax.random.split(key)
    x = jax.random.normal(kx, (B, nIn, H, W), jnp.float32)
    params = init_params(kp, nIn, nOut, kSize, divide=2.0)

    fwd = jax.jit(functools.partial(se_separable_cbr_forward, kSize=kSize, stride=stride))
    out = fwd(x, params)
    out = jax.block_until_ready(out)

    ref = reference(x, params, kSize, stride)
    assert out.shape == (B, nOut, H, W), out.shape
    max_err = float(jnp.max(jnp.abs(out - ref)))
    assert max_err < 1e-3, f"mismatch vs reference: {max_err}"

    print("KERNEL_OK")
</pallas_src>

<mosaic_0001>
module attributes {stable_mosaic.version = 11 : i64} {
  func.func @_depthwise_kernel(%arg0: i32, %arg1: i32, %arg2: memref<1x4x18x18xf32, #tpu.memory_space<vmem>>, %arg3: memref<4x3x3xf32, #tpu.memory_space<vmem>>, %arg4: memref<1x4x16x16xf32, #tpu.memory_space<vmem>>, %arg5: memref<1x4x1xf32, #tpu.memory_space<vmem>>) attributes {dimension_semantics = [#tpu.dimension_semantics<parallel>, #tpu.dimension_semantics<parallel>], iteration_bounds = array<i64: 2, 1>, scalar_prefetch = 0 : i64, scratch_operands = 0 : i64, tpu.core_type = #tpu.core_type<tc>, window_params = [{transform_indices = @transform_0, window_bounds = array<i64: 1, 4, 18, 18>}, {transform_indices = @transform_1, window_bounds = array<i64: 4, 3, 3>}, {transform_indices = @transform_2, window_bounds = array<i64: 1, 4, 16, 16>}, {transform_indices = @transform_3, window_bounds = array<i64: 1, 4, 1>}]} {
    %c0 = arith.constant 0 : index
    %c0_0 = arith.constant 0 : index
    %c0_1 = arith.constant 0 : index
    %c0_2 = arith.constant 0 : index
    %0 = vector.load %arg2[%c0, %c0_0, %c0_1, %c0_2] : memref<1x4x18x18xf32, #tpu.memory_space<vmem>>, vector<1x4x18x18xf32>
    %1 = vector.shape_cast %0 : vector<1x4x18x18xf32> to vector<4x18x18xf32>
    %c0_3 = arith.constant 0 : index
    %c0_4 = arith.constant 0 : index
    %c0_5 = arith.constant 0 : index
    %2 = vector.load %arg3[%c0_3, %c0_4, %c0_5] : memref<4x3x3xf32, #tpu.memory_space<vmem>>, vector<4x3x3xf32>
    %cst = arith.constant 0.000000e+00 : f32
    %3 = vector.broadcast %cst : f32 to vector<4x1xf32>
    %4 = vector.extract_strided_slice %1 {offsets = [0, 0, 0], sizes = [4, 10, 18], strides = [1, 1, 1]} : vector<4x18x18xf32> to vector<4x10x18xf32>
    %cst_6 = arith.constant 0.000000e+00 : f32
    %5 = vector.broadcast %cst_6 : f32 to vector<4x8x16xf32>
    %6 = vector.extract_strided_slice %4 {offsets = [0, 0, 0], sizes = [4, 8, 16], strides = [1, 1, 1]} : vector<4x10x18xf32> to vector<4x8x16xf32>
    %7 = vector.extract_strided_slice %2 {offsets = [0, 0, 0], sizes = [4, 1, 1], strides = [1, 1, 1]} : vector<4x3x3xf32> to vector<4x1x1xf32>
    %8 = vector.broadcast %7 : vector<4x1x1xf32> to vector<4x8x16xf32>
    %9 = arith.mulf %6, %8 : vector<4x8x16xf32>
    %10 = arith.addf %5, %9 : vector<4x8x16xf32>
    %11 = vector.extract_strided_slice %4 {offsets = [0, 0, 1], sizes = [4, 8, 16], strides = [1, 1, 1]} : vector<4x10x18xf32> to vector<4x8x16xf32>
    %12 = vector.extract_strided_slice %2 {offsets = [0, 0, 1], sizes = [4, 1, 1], strides = [1, 1, 1]} : vector<4x3x3xf32> to vector<4x1x1xf32>
    %13 = vector.broadcast %12 : vector<4x1x1xf32> to vector<4x8x16xf32>
    %14 = arith.mulf %11, %13 : vector<4x8x16xf32>
    %15 = arith.addf %10, %14 : vector<4x8x16xf32>
    %16 = vector.extract_strided_slice %4 {offsets = [0, 0, 2], sizes = [4, 8, 16], strides = [1, 1, 1]} : vector<4x10x18xf32> to vector<4x8x16xf32>
    %17 = vector.extract_strided_slice %2 {offsets = [0, 0, 2], sizes = [4, 1, 1], strides = [1, 1, 1]} : vector<4x3x3xf32> to vector<4x1x1xf32>
    %18 = vector.broadcast %17 : vector<4x1x1xf32> to vector<4x8x16xf32>
    %19 = arith.mulf %16, %18 : vector<4x8x16xf32>
    %20 = arith.addf %15, %19 : vector<4x8x16xf32>
    %21 = vector.extract_strided_slice %4 {offsets = [0, 1, 0], sizes = [4, 8, 16], strides = [1, 1, 1]} : vector<4x10x18xf32> to vector<4x8x16xf32>
    %22 = vector.extract_strided_slice %2 {offsets = [0, 1, 0], sizes = [4, 1, 1], strides = [1, 1, 1]} : vector<4x3x3xf32> to vector<4x1x1xf32>
    %23 = vector.broadcast %22 : vector<4x1x1xf32> to vector<4x8x16xf32>
    %24 = arith.mulf %21, %23 : vector<4x8x16xf32>
    %25 = arith.addf %20, %24 : vector<4x8x16xf32>
    %26 = vector.extract_strided_slice %4 {offsets = [0, 1, 1], sizes = [4, 8, 16], strides = [1, 1, 1]} : vector<4x10x18xf32> to vector<4x8x16xf32>
    %27 = vector.extract_strided_slice %2 {offsets = [0, 1, 1], sizes = [4, 1, 1], strides = [1, 1, 1]} : vector<4x3x3xf32> to vector<4x1x1xf32>
    %28 = vector.broadcast %27 : vector<4x1x1xf32> to vector<4x8x16xf32>
    %29 = arith.mulf %26, %28 : vector<4x8x16xf32>
    %30 = arith.addf %25, %29 : vector<4x8x16xf32>
    %31 = vector.extract_strided_slice %4 {offsets = [0, 1, 2], sizes = [4, 8, 16], strides = [1, 1, 1]} : vector<4x10x18xf32> to vector<4x8x16xf32>
    %32 = vector.extract_strided_slice %2 {offsets = [0, 1, 2], sizes = [4, 1, 1], strides = [1, 1, 1]} : vector<4x3x3xf32> to vector<4x1x1xf32>
    %33 = vector.broadcast %32 : vector<4x1x1xf32> to vector<4x8x16xf32>
    %34 = arith.mulf %31, %33 : vector<4x8x16xf32>
    %35 = arith.addf %30, %34 : vector<4x8x16xf32>
    %36 = vector.extract_strided_slice %4 {offsets = [0, 2, 0], sizes = [4, 8, 16], strides = [1, 1, 1]} : vector<4x10x18xf32> to vector<4x8x16xf32>
    %37 = vector.extract_strided_slice %2 {offsets = [0, 2, 0], sizes = [4, 1, 1], strides = [1, 1, 1]} : vector<4x3x3xf32> to vector<4x1x1xf32>
    %38 = vector.broadcast %37 : vector<4x1x1xf32> to vector<4x8x16xf32>
    %39 = arith.mulf %36, %38 : vector<4x8x16xf32>
    %40 = arith.addf %35, %39 : vector<4x8x16xf32>
    %41 = vector.extract_strided_slice %4 {offsets = [0, 2, 1], sizes = [4, 8, 16], strides = [1, 1, 1]} : vector<4x10x18xf32> to vector<4x8x16xf32>
    %42 = vector.extract_strided_slice %2 {offsets = [0, 2, 1], sizes = [4, 1, 1], strides = [1, 1, 1]} : vector<4x3x3xf32> to vector<4x1x1xf32>
    %43 = vector.broadcast %42 : vector<4x1x1xf32> to vector<4x8x16xf32>
    %44 = arith.mulf %41, %43 : vector<4x8x16xf32>
    %45 = arith.addf %40, %44 : vector<4x8x16xf32>
    %46 = vector.extract_strided_slice %4 {offsets = [0, 2, 2], sizes = [4, 8, 16], strides = [1, 1, 1]} : vector<4x10x18xf32> to vector<4x8x16xf32>
    %47 = vector.extract_strided_slice %2 {offsets = [0, 2, 2], sizes = [4, 1, 1], strides = [1, 1, 1]} : vector<4x3x3xf32> to vector<4x1x1xf32>
    %48 = vector.broadcast %47 : vector<4x1x1xf32> to vector<4x8x16xf32>
    %49 = arith.mulf %46, %48 : vector<4x8x16xf32>
    %50 = arith.addf %45, %49 : vector<4x8x16xf32>
    %c0_7 = arith.constant 0 : index
    %c0_8 = arith.constant 0 : index
    %c0_9 = arith.constant 0 : index
    %c0_10 = arith.constant 0 : index
    %51 = vector.load %arg4[%c0_7, %c0_8, %c0_9, %c0_10] : memref<1x4x16x16xf32, #tpu.memory_space<vmem>>, vector<1x4x8x16xf32>
    %52 = vector.shape_cast %51 : vector<1x4x8x16xf32> to vector<4x8x16xf32>
    %53 = vector.shape_cast %50 : vector<4x8x16xf32> to vector<1x4x8x16xf32>
    tpu.vector_store %arg4[%c0_7, %c0_8, %c0_9, %c0_10], %53 {strides = array<i32>} : memref<1x4x16x16xf32, #tpu.memory_space<vmem>>, vector<1x4x8x16xf32>,
    %cst_11 = arith.constant dense<0.000000e+00> : vector<4x8xf32>
    %54 = vector.multi_reduction <add>, %50, %cst_11 [2] : vector<4x8x16xf32> to vector<4x8xf32>
    %cst_12 = arith.constant dense<0.000000e+00> : vector<4xf32>
    %55 = vector.multi_reduction <add>, %54, %cst_12 [1] : vector<4x8xf32> to vector<4xf32>
    %56 = vector.shape_cast %55 : vector<4xf32> to vector<4x1xf32>
    %57 = arith.addf %3, %56 : vector<4x1xf32>
    %58 = vector.extract_strided_slice %1 {offsets = [0, 8, 0], sizes = [4, 10, 18], strides = [1, 1, 1]} : vector<4x18x18xf32> to vector<4x10x18xf32>
    %cst_13 = arith.constant 0.000000e+00 : f32
    %59 = vector.broadcast %cst_13 : f32 to vector<4x8x16xf32>
    %60 = vector.extract_strided_slice %58 {offsets = [0, 0, 0], sizes = [4, 8, 16], strides = [1, 1, 1]} : vector<4x10x18xf32> to vector<4x8x16xf32>
    %61 = vector.extract_strided_slice %2 {offsets = [0, 0, 0], sizes = [4, 1, 1], strides = [1, 1, 1]} : vector<4x3x3xf32> to vector<4x1x1xf32>
    %62 = vector.broadcast %61 : vector<4x1x1xf32> to vector<4x8x16xf32>
    %63 = arith.mulf %60, %62 : vector<4x8x16xf32>
    %64 = arith.addf %59, %63 : vector<4x8x16xf32>
    %65 = vector.extract_strided_slice %58 {offsets = [0, 0, 1], sizes = [4, 8, 16], strides = [1, 1, 1]} : vector<4x10x18xf32> to vector<4x8x16xf32>
    %66 = vector.extract_strided_slice %2 {offsets = [0, 0, 1], sizes = [4, 1, 1], strides = [1, 1, 1]} : vector<4x3x3xf32> to vector<4x1x1xf32>
    %67 = vector.broadcast %66 : vector<4x1x1xf32> to vector<4x8x16xf32>
    %68 = arith.mulf %65, %67 : vector<4x8x16xf32>
    %69 = arith.addf %64, %68 : vector<4x8x16xf32>
    %70 = vector.extract_strided_slice %58 {offsets = [0, 0, 2], sizes = [4, 8, 16], strides = [1, 1, 1]} : vector<4x10x18xf32> to vector<4x8x16xf32>
    %71 = vector.extract_strided_slice %2 {offsets = [0, 0, 2], sizes = [4, 1, 1], strides = [1, 1, 1]} : vector<4x3x3xf32> to vector<4x1x1xf32>
    %72 = vector.broadcast %71 : vector<4x1x1xf32> to vector<4x8x16xf32>
    %73 = arith.mulf %70, %72 : vector<4x8x16xf32>
    %74 = arith.addf %69, %73 : vector<4x8x16xf32>
    %75 = vector.extract_strided_slice %58 {offsets = [0, 1, 0], sizes = [4, 8, 16], strides = [1, 1, 1]} : vector<4x10x18xf32> to vector<4x8x16xf32>
    %76 = vector.extract_strided_slice %2 {offsets = [0, 1, 0], sizes = [4, 1, 1], strides = [1, 1, 1]} : vector<4x3x3xf32> to vector<4x1x1xf32>
    %77 = vector.broadcast %76 : vector<4x1x1xf32> to vector<4x8x16xf32>
    %78 = arith.mulf %75, %77 : vector<4x8x16xf32>
    %79 = arith.addf %74, %78 : vector<4x8x16xf32>
    %80 = vector.extract_strided_slice %58 {offsets = [0, 1, 1], sizes = [4, 8, 16], strides = [1, 1, 1]} : vector<4x10x18xf32> to vector<4x8x16xf32>
    %81 = vector.extract_strided_slice %2 {offsets = [0, 1, 1], sizes = [4, 1, 1], strides = [1, 1, 1]} : vector<4x3x3xf32> to vector<4x1x1xf32>
    %82 = vector.broadcast %81 : vector<4x1x1xf32> to vector<4x8x16xf32>
    %83 = arith.mulf %80, %82 : vector<4x8x16xf32>
    %84 = arith.addf %79, %83 : vector<4x8x16xf32>
    %85 = vector.extract_strided_slice %58 {offsets = [0, 1, 2], sizes = [4, 8, 16], strides = [1, 1, 1]} : vector<4x10x18xf32> to vector<4x8x16xf32>
    %86 = vector.extract_strided_slice %2 {offsets = [0, 1, 2], sizes = [4, 1, 1], strides = [1, 1, 1]} : vector<4x3x3xf32> to vector<4x1x1xf32>
    %87 = vector.broadcast %86 : vector<4x1x1xf32> to vector<4x8x16xf32>
    %88 = arith.mulf %85, %87 : vector<4x8x16xf32>
    %89 = arith.addf %84, %88 : vector<4x8x16xf32>
    %90 = vector.extract_strided_slice %58 {offsets = [0, 2, 0], sizes = [4, 8, 16], strides = [1, 1, 1]} : vector<4x10x18xf32> to vector<4x8x16xf32>
    %91 = vector.extract_strided_slice %2 {offsets = [0, 2, 0], sizes = [4, 1, 1], strides = [1, 1, 1]} : vector<4x3x3xf32> to vector<4x1x1xf32>
    %92 = vector.broadcast %91 : vector<4x1x1xf32> to vector<4x8x16xf32>
    %93 = arith.mulf %90, %92 : vector<4x8x16xf32>
    %94 = arith.addf %89, %93 : vector<4x8x16xf32>
    %95 = vector.extract_strided_slice %58 {offsets = [0, 2, 1], sizes = [4, 8, 16], strides = [1, 1, 1]} : vector<4x10x18xf32> to vector<4x8x16xf32>
    %96 = vector.extract_strided_slice %2 {offsets = [0, 2, 1], sizes = [4, 1, 1], strides = [1, 1, 1]} : vector<4x3x3xf32> to vector<4x1x1xf32>
    %97 = vector.broadcast %96 : vector<4x1x1xf32> to vector<4x8x16xf32>
    %98 = arith.mulf %95, %97 : vector<4x8x16xf32>
    %99 = arith.addf %94, %98 : vector<4x8x16xf32>
    %100 = vector.extract_strided_slice %58 {offsets = [0, 2, 2], sizes = [4, 8, 16], strides = [1, 1, 1]} : vector<4x10x18xf32> to vector<4x8x16xf32>
    %101 = vector.extract_strided_slice %2 {offsets = [0, 2, 2], sizes = [4, 1, 1], strides = [1, 1, 1]} : vector<4x3x3xf32> to vector<4x1x1xf32>
    %102 = vector.broadcast %101 : vector<4x1x1xf32> to vector<4x8x16xf32>
    %103 = arith.mulf %100, %102 : vector<4x8x16xf32>
    %104 = arith.addf %99, %103 : vector<4x8x16xf32>
    %c0_14 = arith.constant 0 : index
    %c0_15 = arith.constant 0 : index
    %c8 = arith.constant 8 : index
    %c0_16 = arith.constant 0 : index
    %105 = vector.load %arg4[%c0_14, %c0_15, %c8, %c0_16] : memref<1x4x16x16xf32, #tpu.memory_space<vmem>>, vector<1x4x8x16xf32>
    %106 = vector.shape_cast %105 : vector<1x4x8x16xf32> to vector<4x8x16xf32>
    %107 = vector.shape_cast %104 : vector<4x8x16xf32> to vector<1x4x8x16xf32>
    tpu.vector_store %arg4[%c0_14, %c0_15, %c8, %c0_16], %107 {strides = array<i32>} : memref<1x4x16x16xf32, #tpu.memory_space<vmem>>, vector<1x4x8x16xf32>,
    %cst_17 = arith.constant dense<0.000000e+00> : vector<4x8xf32>
    %108 = vector.multi_reduction <add>, %104, %cst_17 [2] : vector<4x8x16xf32> to vector<4x8xf32>
    %cst_18 = arith.constant dense<0.000000e+00> : vector<4xf32>
    %109 = vector.multi_reduction <add>, %108, %cst_18 [1] : vector<4x8xf32> to vector<4xf32>
    %110 = vector.shape_cast %109 : vector<4xf32> to vector<4x1xf32>
    %111 = arith.addf %57, %110 : vector<4x1xf32>
    %c0_19 = arith.constant 0 : index
    %c0_20 = arith.constant 0 : index
    %c0_21 = arith.constant 0 : index
    %112 = vector.load %arg5[%c0_19, %c0_20, %c0_21] : memref<1x4x1xf32, #tpu.memory_space<vmem>>, vector<1x4x1xf32>
    %113 = vector.shape_cast %112 : vector<1x4x1xf32> to vector<4x1xf32>
    %114 = vector.shape_cast %111 : vector<4x1xf32> to vector<1x4x1xf32>
    tpu.vector_store %arg5[%c0_19, %c0_20, %c0_21], %114 {strides = array<i32>} : memref<1x4x1xf32, #tpu.memory_space<vmem>>, vector<1x4x1xf32>,
    return
  }
  func.func @transform_0(%arg0: i32, %arg1: i32) -> (i32, i32, i32, i32) {
    %c0_i32 = arith.constant 0 : i32
    %c0_i32_0 = arith.constant 0 : i32
    %c0_i32_1 = arith.constant 0 : i32
    return %arg0, %arg1, %c0_i32, %c0_i32_0 : i32, i32, i32, i32
  }
  func.func @transform_1(%arg0: i32, %arg1: i32) -> (i32, i32, i32) {
    %c0_i32 = arith.constant 0 : i32
    %c0_i32_0 = arith.constant 0 : i32
    %c0_i32_1 = arith.constant 0 : i32
    return %arg1, %c0_i32, %c0_i32_0 : i32, i32, i32
  }
  func.func @transform_2(%arg0: i32, %arg1: i32) -> (i32, i32, i32, i32) {
    %c0_i32 = arith.constant 0 : i32
    %c0_i32_0 = arith.constant 0 : i32
    %c0_i32_1 = arith.constant 0 : i32
    return %arg0, %arg1, %c0_i32, %c0_i32_0 : i32, i32, i32, i32
  }
  func.func @transform_3(%arg0: i32, %arg1: i32) -> (i32, i32, i32) {
    %c0_i32 = arith.constant 0 : i32
    %c0_i32_0 = arith.constant 0 : i32
    return %arg0, %arg1, %c0_i32 : i32, i32, i32
  }
}

module attributes {stable_mosaic.version = 11 : i64} {
  func.func @_fused_se_pw_bn_prelu_kernel(%arg0: i32, %arg1: i32, %arg2: memref<1x4x256xf32, #tpu.memory_space<vmem>>, %arg3: memref<1x4x1xf32, #tpu.memory_space<vmem>>, %arg4: memref<8x4xf32, #tpu.memory_space<vmem>>, %arg5: memref<8x1xf32, #tpu.memory_space<vmem>>, %arg6: memref<8x1xf32, #tpu.memory_space<vmem>>, %arg7: memref<8x1xf32, #tpu.memory_space<vmem>>, %arg8: memref<1x8x256xf32, #tpu.memory_space<vmem>>) attributes {dimension_semantics = [#tpu.dimension_semantics<parallel>, #tpu.dimension_semantics<parallel>], iteration_bounds = array<i64: 2, 1>, scalar_prefetch = 0 : i64, scratch_operands = 0 : i64, tpu.core_type = #tpu.core_type<tc>, window_params = [{transform_indices = @transform_0, window_bounds = array<i64: 1, 4, 256>}, {transform_indices = @transform_1, window_bounds = array<i64: 1, 4, 1>}, {pipeline_mode = #tpu.pipeline_mode<synchronous>, transform_indices = @transform_2, window_bounds = array<i64: 8, 4>}, {pipeline_mode = #tpu.pipeline_mode<synchronous>, transform_indices = @transform_3, window_bounds = array<i64: 8, 1>}, {pipeline_mode = #tpu.pipeline_mode<synchronous>, transform_indices = @transform_4, window_bounds = array<i64: 8, 1>}, {pipeline_mode = #tpu.pipeline_mode<synchronous>, transform_indices = @transform_5, window_bounds = array<i64: 8, 1>}, {transform_indices = @transform_6, window_bounds = array<i64: 1, 8, 256>}]} {
    %c0 = arith.constant 0 : index
    %c0_0 = arith.constant 0 : index
    %c0_1 = arith.constant 0 : index
    %0 = vector.load %arg2[%c0, %c0_0, %c0_1] : memref<1x4x256xf32, #tpu.memory_space<vmem>>, vector<1x4x256xf32>
    %1 = vector.shape_cast %0 : vector<1x4x256xf32> to vector<4x256xf32>
    %c0_2 = arith.constant 0 : index
    %c0_3 = arith.constant 0 : index
    %c0_4 = arith.constant 0 : index
    %2 = vector.load %arg3[%c0_2, %c0_3, %c0_4] : memref<1x4x1xf32, #tpu.memory_space<vmem>>, vector<1x4x1xf32>
    %3 = vector.shape_cast %2 : vector<1x4x1xf32> to vector<4x1xf32>
    %4 = vector.broadcast %3 : vector<4x1xf32> to vector<4x256xf32>
    %5 = arith.mulf %1, %4 : vector<4x256xf32>
    %c0_5 = arith.constant 0 : index
    %c0_6 = arith.constant 0 : index
    %6 = vector.load %arg4[%c0_5, %c0_6] : memref<8x4xf32, #tpu.memory_space<vmem>>, vector<8x4xf32>
    %cst = arith.constant 0.000000e+00 : f32
    %7 = vector.broadcast %cst : f32 to vector<8x256xf32>
    %8 = vector.extract_strided_slice %6 {offsets = [0, 0], sizes = [8, 1], strides = [1, 1]} : vector<8x4xf32> to vector<8x1xf32>
    %9 = vector.extract_strided_slice %5 {offsets = [0, 0], sizes = [1, 256], strides = [1, 1]} : vector<4x256xf32> to vector<1x256xf32>
    %10 = vector.broadcast %8 : vector<8x1xf32> to vector<8x256xf32>
    %11 = vector.broadcast %9 : vector<1x256xf32> to vector<8x256xf32>
    %12 = arith.mulf %10, %11 : vector<8x256xf32>
    %13 = arith.addf %7, %12 : vector<8x256xf32>
    %14 = vector.extract_strided_slice %6 {offsets = [0, 1], sizes = [8, 1], strides = [1, 1]} : vector<8x4xf32> to vector<8x1xf32>
    %15 = vector.extract_strided_slice %5 {offsets = [1, 0], sizes = [1, 256], strides = [1, 1]} : vector<4x256xf32> to vector<1x256xf32>
    %16 = vector.broadcast %14 : vector<8x1xf32> to vector<8x256xf32>
    %17 = vector.broadcast %15 : vector<1x256xf32> to vector<8x256xf32>
    %18 = arith.mulf %16, %17 : vector<8x256xf32>
    %19 = arith.addf %13, %18 : vector<8x256xf32>
    %20 = vector.extract_strided_slice %6 {offsets = [0, 2], sizes = [8, 1], strides = [1, 1]} : vector<8x4xf32> to vector<8x1xf32>
    %21 = vector.extract_strided_slice %5 {offsets = [2, 0], sizes = [1, 256], strides = [1, 1]} : vector<4x256xf32> to vector<1x256xf32>
    %22 = vector.broadcast %20 : vector<8x1xf32> to vector<8x256xf32>
    %23 = vector.broadcast %21 : vector<1x256xf32> to vector<8x256xf32>
    %24 = arith.mulf %22, %23 : vector<8x256xf32>
    %25 = arith.addf %19, %24 : vector<8x256xf32>
    %26 = vector.extract_strided_slice %6 {offsets = [0, 3], sizes = [8, 1], strides = [1, 1]} : vector<8x4xf32> to vector<8x1xf32>
    %27 = vector.extract_strided_slice %5 {offsets = [3, 0], sizes = [1, 256], strides = [1, 1]} : vector<4x256xf32> to vector<1x256xf32>
    %28 = vector.broadcast %26 : vector<8x1xf32> to vector<8x256xf32>
    %29 = vector.broadcast %27 : vector<1x256xf32> to vector<8x256xf32>
    %30 = arith.mulf %28, %29 : vector<8x256xf32>
    %31 = arith.addf %25, %30 : vector<8x256xf32>
    %c0_7 = arith.constant 0 : index
    %c0_8 = arith.constant 0 : index
    %32 = vector.load %arg5[%c0_7, %c0_8] : memref<8x1xf32, #tpu.memory_space<vmem>>, vector<8x1xf32>
    %33 = vector.broadcast %32 : vector<8x1xf32> to vector<8x256xf32>
    %34 = arith.mulf %31, %33 : vector<8x256xf32>
    %c0_9 = arith.constant 0 : index
    %c0_10 = arith.constant 0 : index
    %35 = vector.load %arg6[%c0_9, %c0_10] : memref<8x1xf32, #tpu.memory_space<vmem>>, vector<8x1xf32>
    %36 = vector.broadcast %35 : vector<8x1xf32> to vector<8x256xf32>
    %37 = arith.addf %34, %36 : vector<8x256xf32>
    %cst_11 = arith.constant 0.000000e+00 : f32
    %38 = vector.broadcast %cst_11 : f32 to vector<8x256xf32>
    %39 = arith.cmpf oge, %37, %38 : vector<8x256xf32>
    %c0_12 = arith.constant 0 : index
    %c0_13 = arith.constant 0 : index
    %40 = vector.load %arg7[%c0_12, %c0_13] : memref<8x1xf32, #tpu.memory_space<vmem>>, vector<8x1xf32>
    %41 = vector.broadcast %40 : vector<8x1xf32> to vector<8x256xf32>
    %42 = arith.mulf %41, %37 : vector<8x256xf32>
    %43 = arith.select %39, %37, %42 : vector<8x256xi1>, vector<8x256xf32>
    %c0_14 = arith.constant 0 : index
    %c0_15 = arith.constant 0 : index
    %c0_16 = arith.constant 0 : index
    %44 = vector.load %arg8[%c0_14, %c0_15, %c0_16] : memref<1x8x256xf32, #tpu.memory_space<vmem>>, vector<1x8x256xf32>
    %45 = vector.shape_cast %44 : vector<1x8x256xf32> to vector<8x256xf32>
    %46 = vector.shape_cast %43 : vector<8x256xf32> to vector<1x8x256xf32>
    tpu.vector_store %arg8[%c0_14, %c0_15, %c0_16], %46 {strides = array<i32>} : memref<1x8x256xf32, #tpu.memory_space<vmem>>, vector<1x8x256xf32>,
    return
  }
  func.func @transform_0(%arg0: i32, %arg1: i32) -> (i32, i32, i32) {
    %c0_i32 = arith.constant 0 : i32
    %c0_i32_0 = arith.constant 0 : i32
    return %arg0, %c0_i32, %arg1 : i32, i32, i32
  }
  func.func @transform_1(%arg0: i32, %arg1: i32) -> (i32, i32, i32) {
    %c0_i32 = arith.constant 0 : i32
    %c0_i32_0 = arith.constant 0 : i32
    %c0_i32_1 = arith.constant 0 : i32
    return %arg0, %c0_i32, %c0_i32_0 : i32, i32, i32
  }
  func.func @transform_2(%arg0: i32, %arg1: i32) -> (i32, i32) {
    %c0_i32 = arith.constant 0 : i32
    %c0_i32_0 = arith.constant 0 : i32
    %c0_i32_1 = arith.constant 0 : i32
    return %c0_i32, %c0_i32_0 : i32, i32
  }
  func.func @transform_3(%arg0: i32, %arg1: i32) -> (i32, i32) {
    %c0_i32 = arith.constant 0 : i32
    %c0_i32_0 = arith.constant 0 : i32
    %c0_i32_1 = arith.constant 0 : i32
    return %c0_i32, %c0_i32_0 : i32, i32
  }
  func.func @transform_4(%arg0: i32, %arg1: i32) -> (i32, i32) {
    %c0_i32 = arith.constant 0 : i32
    %c0_i32_0 = arith.constant 0 : i32
    %c0_i32_1 = arith.constant 0 : i32
    return %c0_i32, %c0_i32_0 : i32, i32
  }
  func.func @transform_5(%arg0: i32, %arg1: i32) -> (i32, i32) {
    %c0_i32 = arith.constant 0 : i32
    %c0_i32_0 = arith.constant 0 : i32
    %c0_i32_1 = arith.constant 0 : i32
    return %c0_i32, %c0_i32_0 : i32, i32
  }
  func.func @transform_6(%arg0: i32, %arg1: i32) -> (i32, i32, i32) {
    %c0_i32 = arith.constant 0 : i32
    %c0_i32_0 = arith.constant 0 : i32
    return %arg0, %c0_i32, %arg1 : i32, i32, i32
  }
}

</mosaic_0001>

<llo_original>
// kernel: se_separable_cbr_forward.3
$region0: #{se_separable_cbr_forward.3}
  #allocation0 [shape = 'u32[]', space=smem, size = 0x4, offset = 0x4, fixed_abs, tag = 'smem constant byte address 0x4 - core index']
  #allocation1 [shape = 'u32[144,128]{1,0:T(1,128)}', space=vmem, size = 0x12000, scoped, tag = 'internal scratch']
  %s0 = inlined_call_operand.vmem [shape: f32[2,4,256], index: 0, kind: input, shape index: {}]
  %s1 = inlined_call_operand.vmem [shape: f32[2,4,1], index: 1, kind: input, shape index: {}]
  %s2 = inlined_call_operand.vmem [shape: f32[8,4], index: 2, kind: input, shape index: {}]
  %s3 = inlined_call_operand.vmem [shape: f32[8,1], index: 3, kind: input, shape index: {}]
  %s4 = inlined_call_operand.vmem [shape: f32[8,1], index: 4, kind: input, shape index: {}]
  %s5 = inlined_call_operand.vmem [shape: f32[8,1], index: 5, kind: input, shape index: {}]
  %s6 = inlined_call_operand.vmem [shape: f32[2,8,256], index: 6, kind: output, shape index: {}]
  %s7 = sld [smem:[#allocation0]]
  $region57: #{se_separable_cbr_forward.3} parent=0
    _
  %s9 = ssub.s32 1, %s7
  %s10 = scalar_select 0, %s9, %s7
  loop: start=0, step=1, limit=4
  $region2: #{se_separable_cbr_forward.3} parent=0 // loop_pre_header
    _
  $region3: #{se_separable_cbr_forward.3} parent=0 // loop_header
    %s12 = sphi 0, %s16
    %p13 = scmp.ge.s32.totalorder %s12, 4
    %s19 = sphi 0, %s31
    %s20 = sphi 0, %s27
    %s21 = sphi 0, %s19
    %s22 = sphi 0, %s20
    %s23 = sphi 0, %s21
    %s24 = sphi 0, %s22
    %s36 = sphi 0, %s38
    %s39 = sphi 0, %s36
    %s40 = sphi 0, %s39
    %s56 = sphi 0, %s40
    %s62 = sphi 0, %s64
    %s65 = sphi 0, %s62
    %s66 = sphi 0, %s65
    %s82 = sphi 0, %s66
    %s86 = sphi 0, %s86
    %s88 = sphi 0, %s86
    %s89 = sphi 0, %s88
    %s103 = sphi 0, %s89
    %s107 = sphi 0, %s107
    %s109 = sphi 0, %s107
    %s110 = sphi 0, %s109
    %s124 = sphi 0, %s110
    %s128 = sphi 0, %s128
    %s130 = sphi 0, %s128
    %s131 = sphi 0, %s130
    %s145 = sphi 0, %s131
    %s149 = sphi 0, %s149
    %s151 = sphi 0, %s149
    %s152 = sphi 0, %s151
    %s166 = sphi 0, %s152
    %s174 = sphi 0, %s176
    %s177 = sphi 0, %s174
    %s178 = sphi 0, %s177
    %s194 = sphi 0, %s178
  $region4: #{se_separable_cbr_forward.3} parent=0 // loop_header_branch
    %15 = sbr.rel (%p13) target = $region8
  $region5: #{se_separable_cbr_forward.3} parent=0 // loop_body
    %s17 = ssub.s32 %s12, 1
    %s18 = ssub.s32 %s12, 2
    %s25 = sadd.s32 1, %s20
    %p26 = scmp.ge.s32.totalorder %s25, 1
    %s27 = scalar_select %p26, 0, %s25
    %s28 = sadd.s32 1, %s19
    %s29 = scalar_select %p26, %s28, %s19
    %p30 = scmp.ge.s32.totalorder %s29, 2
    %s31 = scalar_select %p30, 0, %s29
    %s32 = ssub.s32 %s19, %s31
    %s33 = ssub.s32 %s20, %s27
    %s34 = sor.u32 %s32, %s33
    %p35 = scmp.eq.s32.totalorder %s34, 0
    %s37 = sadd.s32 %s36, 1
    %s38 = scalar_select %p35, %s36, %s37
    %p41 = pneg %p35
    %p42 = scmp.eq.s32.totalorder %s12, 1
    %p43 = por %p41, %p42
    %p44 = scmp.ne.s32.totalorder %s36, %s39
    %p45 = scmp.eq.s32.totalorder %s12, 0
    %p46 = por %p44, %p45
    %p47 = scmp.ne.s32.totalorder %s36, %s39
    %p48 = scmp.eq.s32.totalorder %s17, 1
    %p49 = por %p47, %p48
    %p50 = scmp.ne.s32.totalorder %s39, %s40
    %p51 = scmp.eq.s32.totalorder %s17, 0
    %p52 = por %p50, %p51
    %p53 = scmp.ne.s32.totalorder %s39, %s40
    %p54 = scmp.eq.s32.totalorder %s18, 1
    %p55 = por %p53, %p54
    %p57 = scmp.ne.s32.totalorder %s40, %s56
    %p58 = scmp.eq.s32.totalorder %s18, 0
    %p59 = por %p57, %p58
    %s60 = ssub.s32 %s19, %s31
    %p61 = scmp.eq.s32.totalorder %s60, 0
    %s63 = sadd.s32 %s62, 1
    %s64 = scalar_select %p61, %s62, %s63
    %p67 = pneg %p61
    %p68 = scmp.eq.s32.totalorder %s12, 1
    %p69 = por %p67, %p68
    %p70 = scmp.ne.s32.totalorder %s62, %s65
    %p71 = scmp.eq.s32.totalorder %s12, 0
    %p72 = por %p70, %p71
    %p73 = scmp.ne.s32.totalorder %s62, %s65
    %p74 = scmp.eq.s32.totalorder %s17, 1
    %p75 = por %p73, %p74
    %p76 = scmp.ne.s32.totalorder %s65, %s66
    %p77 = scmp.eq.s32.totalorder %s17, 0
    %p78 = por %p76, %p77
    %p79 = scmp.ne.s32.totalorder %s65, %s66
    %p80 = scmp.eq.s32.totalorder %s18, 1
    %p81 = por %p79, %p80
    %p83 = scmp.ne.s32.totalorder %s66, %s82
    %p84 = scmp.eq.s32.totalorder %s18, 0
    %p85 = por %p83, %p84
    %s87 = sadd.s32 %s86, 1
    %p90 = scmp.eq.s32.totalorder %s12, 1
    %p91 = scmp.ne.s32.totalorder %s86, %s88
    %p92 = scmp.eq.s32.totalorder %s12, 0
    %p93 = por %p91, %p92
    %p94 = scmp.ne.s32.totalorder %s86, %s88
    %p95 = scmp.eq.s32.totalorder %s17, 1
    %p96 = por %p94, %p95
    %p97 = scmp.ne.s32.totalorder %s88, %s89
    %p98 = scmp.eq.s32.totalorder %s17, 0
    %p99 = por %p97, %p98
    %p100 = scmp.ne.s32.totalorder %s88, %s89
    %p101 = scmp.eq.s32.totalorder %s18, 1
    %p102 = por %p100, %p101
    %p104 = scmp.ne.s32.totalorder %s89, %s103
    %p105 = scmp.eq.s32.totalorder %s18, 0
    %p106 = por %p104, %p105
    %s108 = sadd.s32 %s107, 1
    %p111 = scmp.eq.s32.totalorder %s12, 1
    %p112 = scmp.ne.s32.totalorder %s107, %s109
    %p113 = scmp.eq.s32.totalorder %s12, 0
    %p114 = por %p112, %p113
    %p115 = scmp.ne.s32.totalorder %s107, %s109
    %p116 = scmp.eq.s32.totalorder %s17, 1
    %p117 = por %p115, %p116
    %p118 = scmp.ne.s32.totalorder %s109, %s110
    %p119 = scmp.eq.s32.totalorder %s17, 0
    %p120 = por %p118, %p119
    %p121 = scmp.ne.s32.totalorder %s109, %s110
    %p122 = scmp.eq.s32.totalorder %s18, 1
    %p123 = por %p121, %p122
    %p125 = scmp.ne.s32.totalorder %s110, %s124
    %p126 = scmp.eq.s32.totalorder %s18, 0
    %p127 = por %p125, %p126
    %s129 = sadd.s32 %s128, 1
    %p132 = scmp.eq.s32.totalorder %s12, 1
    %p133 = scmp.ne.s32.totalorder %s128, %s130
    %p134 = scmp.eq.s32.totalorder %s12, 0
    %p135 = por %p133, %p134
    %p136 = scmp.ne.s32.totalorder %s128, %s130
    %p137 = scmp.eq.s32.totalorder %s17, 1
    %p138 = por %p136, %p137
    %p139 = scmp.ne.s32.totalorder %s130, %s131
    %p140 = scmp.eq.s32.totalorder %s17, 0
    %p141 = por %p139, %p140
    %p142 = scmp.ne.s32.totalorder %s130, %s131
    %p143 = scmp.eq.s32.totalorder %s18, 1
    %p144 = por %p142, %p143
    %p146 = scmp.ne.s32.totalorder %s131, %s145
    %p147 = scmp.eq.s32.totalorder %s18, 0
    %p148 = por %p146, %p147
    %s150 = sadd.s32 %s149, 1
    %p153 = scmp.eq.s32.totalorder %s12, 1
    %p154 = scmp.ne.s32.totalorder %s149, %s151
    %p155 = scmp.eq.s32.totalorder %s12, 0
    %p156 = por %p154, %p155
    %p157 = scmp.ne.s32.totalorder %s149, %s151
    %p158 = scmp.eq.s32.totalorder %s17, 1
    %p159 = por %p157, %p158
    %p160 = scmp.ne.s32.totalorder %s151, %s152
    %p161 = scmp.eq.s32.totalorder %s17, 0
    %p162 = por %p160, %p161
    %p163 = scmp.ne.s32.totalorder %s151, %s152
    %p164 = scmp.eq.s32.totalorder %s18, 1
    %p165 = por %p163, %p164
    %p167 = scmp.ne.s32.totalorder %s152, %s166
    %p168 = scmp.eq.s32.totalorder %s18, 0
    %p169 = por %p167, %p168
    %s170 = ssub.s32 %s19, %s31
    %s171 = ssub.s32 %s20, %s27
    %s172 = sor.u32 %s170, %s171
    %p173 = scmp.eq.s32.totalorder %s172, 0
    %s175 = sadd.s32 %s174, 1
    %s176 = scalar_select %p173, %s174, %s175
    %p179 = pneg %p173
    %p180 = scmp.eq.s32.totalorder %s12, 1
    %p181 = por %p179, %p180
    %p182 = scmp.ne.s32.totalorder %s174, %s177
    %p183 = scmp.eq.s32.totalorder %s12, 0
    %p184 = por %p182, %p183
    %p185 = scmp.ne.s32.totalorder %s174, %s177
    %p186 = scmp.eq.s32.totalorder %s17, 1
    %p187 = por %p185, %p186
    %p188 = scmp.ne.s32.totalorder %s177, %s178
    %p189 = scmp.eq.s32.totalorder %s17, 0
    %p190 = por %p188, %p189
    %p191 = scmp.ne.s32.totalorder %s177, %s178
    %p192 = scmp.eq.s32.totalorder %s18, 1
    %p193 = por %p191, %p192
    %p195 = scmp.ne.s32.totalorder %s178, %s194
    %p196 = scmp.eq.s32.totalorder %s18, 0
    %p197 = por %p195, %p196
    %p198 = scmp.le.s32.totalorder 1, %s12
    %p199 = scmp.lt.s32.totalorder %s12, 3
    %p200 = pnand %p198, %p199
    %p201 = pneg %p200
    // Predicated region
    $region9: #{se_separable_cbr_forward.3} parent=5 // pred_check
      _
    $region10: #{se_separable_cbr_forward.3} parent=5 // pred_check_branch
      %203 = sbr.rel (%p200) target = $region12
    $region11: #{se_separable_cbr_forward.3} parent=5 // pred_region
      %s204 = ssub.s32 %s12, 1
      // Predicated region
      $region13: #{se_separable_cbr_forward.3} parent=11 // pred_check
        %p205 = pneg %p99
      $region14: #{se_separable_cbr_forward.3} parent=11 // pred_check_branch
        %207 = sbr.rel (%p205) target = $region16
      $region15: #{se_separable_cbr_forward.3} parent=11 // pred_region
        _
      $region16: #{se_separable_cbr_forward.3} parent=11 // pred_fallthru
        _
      // Predicated region
      $region17: #{se_separable_cbr_forward.3} parent=11 // pred_check
        %p208 = pneg %p120
      $region18: #{se_separable_cbr_forward.3} parent=11 // pred_check_branch
        %210 = sbr.rel (%p208) target = $region20
      $region19: #{se_separable_cbr_forward.3} parent=11 // pred_region
        _
      $region20: #{se_separable_cbr_forward.3} parent=11 // pred_fallthru
        _
      // Predicated region
      $region21: #{se_separable_cbr_forward.3} parent=11 // pred_check
        %p211 = pneg %p141
      $region22: #{se_separable_cbr_forward.3} parent=11 // pred_check_branch
        %213 = sbr.rel (%p211) target = $region24
      $region23: #{se_separable_cbr_forward.3} parent=11 // pred_region
        _
      $region24: #{se_separable_cbr_forward.3} parent=11 // pred_fallthru
        _
      // Predicated region
      $region25: #{se_separable_cbr_forward.3} parent=11 // pred_check
        %p214 = pneg %p162
      $region26: #{se_separable_cbr_forward.3} parent=11 // pred_check_branch
        %216 = sbr.rel (%p214) target = $region28
      $region27: #{se_separable_cbr_forward.3} parent=11 // pred_region
        _
      $region28: #{se_separable_cbr_forward.3} parent=11 // pred_fallthru
        _
    $region12: #{se_separable_cbr_forward.3} parent=5 // pred_fallthru
      _
    %p217 = scmp.lt.s32.totalorder %s12, 2
    // Predicated region
    $region29: #{se_separable_cbr_forward.3} parent=5 // pred_check
      %p218 = pneg %p217
    $region30: #{se_separable_cbr_forward.3} parent=5 // pred_check_branch
      %220 = sbr.rel (%p218) target = $region32
    $region31: #{se_separable_cbr_forward.3} parent=5 // pred_region
      // Predicated region
      $region33: #{se_separable_cbr_forward.3} parent=31 // pred_check
        %p221 = pneg %p46
      $region34: #{se_separable_cbr_forward.3} parent=31 // pred_check_branch
        %223 = sbr.rel (%p221) target = $region36
      $region35: #{se_separable_cbr_forward.3} parent=31 // pred_region
        %s224 = smul.u32 2, %s20
        %p225 = scmp.lt.s32.totalorder %s19, 1
        %s226 = scalar_select %p225, %s19, 1
        %p227 = scmp.lt.s32.totalorder %s224, 1
        %s228 = scalar_select %p227, %s224, 1
        %s229 = smul.addr %s226, 2
        %s230 = sadd.s32 %s228, %s229
        %s231 = smul.addr %s230, 4
        %s232 = scalar_lea.vmem %s0, %s231
        %s233 = smul.u32 2, %s20
      $region36: #{se_separable_cbr_forward.3} parent=31 // pred_fallthru
        _
      // Predicated region
      $region37: #{se_separable_cbr_forward.3} parent=31 // pred_check
        %p234 = pneg %p72
      $region38: #{se_separable_cbr_forward.3} parent=31 // pred_check_branch
        %236 = sbr.rel (%p234) target = $region40
      $region39: #{se_separable_cbr_forward.3} parent=31 // pred_region
        %p237 = scmp.lt.s32.totalorder %s19, 1
        %s238 = scalar_select %p237, %s19, 1
        %s239 = smul.addr %s238, 4
        %s240 = scalar_lea.vmem %s1, %s239
      $region40: #{se_separable_cbr_forward.3} parent=31 // pred_fallthru
        _
    $region32: #{se_separable_cbr_forward.3} parent=5 // pred_fallthru
      _
    %p241 = scmp.le.s32.totalorder 1, %s12
    %p242 = scmp.lt.s32.totalorder %s12, 3
    %p243 = pnand %p241, %p242
    %p244 = pneg %p243
    // Predicated region
    $region41: #{se_separable_cbr_forward.3} parent=5 // pred_check
      _
    $region42: #{se_separable_cbr_forward.3} parent=5 // pred_check_branch
      %246 = sbr.rel (%p243) target = $region44
    $region43: #{se_separable_cbr_forward.3} parent=5 // pred_region
      %s247 = ssub.s32 %s12, 1
      %s248 = smul.u32 2, %s22
      %p249 = scmp.lt.s32.totalorder %s21, 1
      %s250 = scalar_select %p249, %s21, 1
      %p251 = scmp.lt.s32.totalorder %s248, 1
      %s252 = scalar_select %p251, %s248, 1
      %s253 = smul.addr %s250, 2
      %s254 = sadd.s32 %s252, %s253
      %s255 = smul.addr %s254, 4
      %s256 = scalar_lea.vmem %s0, %s255
      %p257 = pneg %p52
      %p258 = pneg %p49
      %p259 = scmp.lt.s32.totalorder %s21, 1
      %s260 = scalar_select %p259, %s21, 1
      %s261 = smul.addr %s260, 4
      %s262 = scalar_lea.vmem %s1, %s261
      %p263 = pneg %p78
      %p264 = pneg %p75
      %p265 = pneg %p99
      %p266 = pneg %p96
      %p267 = pneg %p120
      %p268 = pneg %p117
      %p269 = pneg %p141
      %p270 = pneg %p138
      %p271 = pneg %p162
      %p272 = pneg %p159
      %p273 = pneg %p190
      %p274 = pneg %p187
      %s275 = smul.u32 2, %s22
      %p276 = scmp.lt.s32.totalorder %s21, 1
      %s277 = scalar_select %p276, %s21, 1
      %p278 = scmp.lt.s32.totalorder %s275, 1
      %s279 = scalar_select %p278, %s275, 1
      %s280 = smul.addr %s277, 2
      %s281 = sadd.s32 %s279, %s280
      %s282 = smul.addr %s281, 8
      %s283 = scalar_lea.vmem %s6, %s282
      %s284 = smul.u32 2, %s22
      %p285 = scmp.lt.s32.totalorder %s21, 1
      %s286 = scalar_select %p285, %s21, 1
      %p287 = scmp.lt.s32.totalorder %s284, 1
      %s288 = scalar_select %p287, %s284, 1
      %s289 = smul.addr %s286, 2
      %s290 = sadd.s32 %s288, %s289
      %s291 = smul.addr %s290, 4
      %s292 = scalar_lea.vmem %s0, %s291
      %s293 = smul.u32 2, %s22
      %p294 = scmp.lt.s32.totalorder %s21, 1
      %s295 = scalar_select %p294, %s21, 1
      %s296 = smul.addr %s295, 4
      %s297 = scalar_lea.vmem %s1, %s296
      %s298 = smul.u32 2, %s22
      %p299 = scmp.lt.s32.totalorder %s21, 1
      %s300 = scalar_select %p299, %s21, 1
      %p301 = scmp.lt.s32.totalorder %s298, 1
      %s302 = scalar_select %p301, %s298, 1
      %s303 = smul.addr %s300, 2
      %s304 = sadd.s32 %s302, %s303
      %s305 = smul.addr %s304, 8
      %s306 = scalar_lea.vmem %s6, %s305
      %s307 = smul.u32 2, %s22
      %v308 = vld [vmem:[%s292] sm:$0xff]
      %v309 = vld [vmem:[%s297] sm:$0xf]
      %311 = vset.pattern.permute.xlu0 0
      %312 = vperm.xlu0 %311, %v309
      %v313 = vpop.permute.xlu0 %312
      %v315 = vunpack.c.l.s4 839922192
      %v316 = vunpack.c.0.s8 %v315
      %v317 = vlaneseq
      %v318 = vshrl.u32 %v317, 7
      %v319 = vsub.s32 %v316, %v318
      %v320 = vrot.slane %v313, %v319
      %v322 = vmul.f32 %v308, %v320
      %v323 = vld [vmem:[%s2] sm:$0xff]
      %325 = vset.pattern.permute.xlu0 0
      %326 = vperm.xlu0 %325, %v323
      %v327 = vpop.permute.xlu0 %326
      %v330 = vlaneseq
      %v331 = vshrl.u32 %v330, 7
      %v332 = vsub.s32 0, %v331
      %v333 = vrot.slane %v322, %v332
      %v334 = vlaneseq
      %v335 = vshrl.u32 %v334, 7
      %v336 = vsub.s32 4, %v335
      %v337 = vrot.slane %v322, %v336
      %v340 = vlaneseq
      %v341 = vshrl.u32 %v340, 7
      %v342 = vsub.s32 0, %v341
      %v343 = vrot.slane %v333, %v342
      %v344 = vlaneseq
      %v345 = vshrl.u32 %v344, 7
      %v346 = vsub.s32 0, %v345
      %v347 = vrot.slane %v337, %v346
      %v348 = vmul.f32 %v327, %v343
      %v349 = vmul.f32 %v327, %v347
      %v350 = vadd.f32 %v348, 0.0
      %v351 = vadd.f32 %v349, 0.0
      %352 = vset.pattern.permute.xlu0 1
      %353 = vperm.xlu0 %352, %v323
      %v354 = vpop.permute.xlu0 %353
      %v356 = vlaneseq
      %v357 = vshrl.u32 %v356, 7
      %v358 = vsub.s32 1, %v357
      %v359 = vrot.slane %v322, %v358
      %v360 = vlaneseq
      %v361 = vshrl.u32 %v360, 7
      %v362 = vsub.s32 5, %v361
      %v363 = vrot.slane %v322, %v362
      %v366 = vlaneseq
      %v367 = vshrl.u32 %v366, 7
      %v368 = vsub.s32 1, %v367
      %v369 = vrot.slane %v359, %v368
      %v370 = vlaneseq
      %v371 = vshrl.u32 %v370, 7
      %v372 = vsub.s32 1, %v371
      %v373 = vrot.slane %v363, %v372
      %v374 = vmul.f32 %v354, %v369
      %v375 = vmul.f32 %v354, %v373
      %v376 = vadd.f32 %v350, %v374
      %v377 = vadd.f32 %v351, %v375
      %378 = vset.pattern.permute.xlu0 2
      %379 = vperm.xlu0 %378, %v323
      %v380 = vpop.permute.xlu0 %379
      %v382 = vlaneseq
      %v383 = vshrl.u32 %v382, 7
      %v384 = vsub.s32 2, %v383
      %v385 = vrot.slane %v322, %v384
      %v386 = vlaneseq
      %v387 = vshrl.u32 %v386, 7
      %v388 = vsub.s32 6, %v387
      %v389 = vrot.slane %v322, %v388
      %v392 = vlaneseq
      %v393 = vshrl.u32 %v392, 7
      %v394 = vsub.s32 2, %v393
      %v395 = vrot.slane %v385, %v394
      %v396 = vlaneseq
      %v397 = vshrl.u32 %v396, 7
      %v398 = vsub.s32 2, %v397
      %v399 = vrot.slane %v389, %v398
      %v400 = vmul.f32 %v380, %v395
      %v401 = vmul.f32 %v380, %v399
      %v402 = vadd.f32 %v376, %v400
      %v403 = vadd.f32 %v377, %v401
      %404 = vset.pattern.permute.xlu0 3
      %405 = vperm.xlu0 %404, %v323
      %v406 = vpop.permute.xlu0 %405
      %v408 = vlaneseq
      %v409 = vshrl.u32 %v408, 7
      %v410 = vsub.s32 3, %v409
      %v411 = vrot.slane %v322, %v410
      %v412 = vlaneseq
      %v413 = vshrl.u32 %v412, 7
      %v414 = vsub.s32 7, %v413
      %v415 = vrot.slane %v322, %v414
      %v418 = vlaneseq
      %v419 = vshrl.u32 %v418, 7
      %v420 = vsub.s32 3, %v419
      %v421 = vrot.slane %v411, %v420
      %v422 = vlaneseq
      %v423 = vshrl.u32 %v422, 7
      %v424 = vsub.s32 3, %v423
      %v425 = vrot.slane %v415, %v424
      %v426 = vmul.f32 %v406, %v421
      %v427 = vmul.f32 %v406, %v425
      %v428 = vadd.f32 %v402, %v426
      %v429 = vadd.f32 %v403, %v427
      %v430 = vld [vmem:[%s3] sm:$0xff]
      %432 = vset.pattern.permute.xlu0 0
      %433 = vperm.xlu0 %432, %v430
      %v434 = vpop.permute.xlu0 %433
      %v436 = vmul.f32 %v428, %v434
      %v437 = vmul.f32 %v429, %v434
      %v438 = vld [vmem:[%s4] sm:$0xff]
      %440 = vset.pattern.permute.xlu0 0
      %441 = vperm.xlu0 %440, %v438
      %v442 = vpop.permute.xlu0 %441
      %v444 = vadd.f32 %v436, %v442
      %v445 = vadd.f32 %v437, %v442
      %vm446 = vcmp.ge.f32.partialorder %v444, 0.0
      %vm447 = vcmp.ge.f32.partialorder %v445, 0.0
      %v448 = vld [vmem:[%s5] sm:$0xff]
      %450 = vset.pattern.permute.xlu0 0
      %451 = vperm.xlu0 %450, %v448
      %v452 = vpop.permute.xlu0 %451
      %v454 = vmul.f32 %v452, %v444
      %v455 = vmul.f32 %v452, %v445
      %v456 = vsel %vm446, %v444, %v454
      %v457 = vsel %vm447, %v445, %v455
      %458 = vst [vmem:[%s306] sm:$0xff] %v456
      %459 = vst [vmem:[%s306 + $0x8] sm:$0xff] %v457
      %s460 = smul.u32 2, %s22
      %p461 = scmp.lt.s32.totalorder %s21, 1
      %s462 = scalar_select %p461, %s21, 1
      %p463 = scmp.lt.s32.totalorder %s460, 1
      %s464 = scalar_select %p463, %s460, 1
      %s465 = smul.addr %s462, 2
      %s466 = sadd.s32 %s464, %s465
      %s467 = smul.addr %s466, 8
      %s468 = scalar_lea.vmem %s6, %s467
      // Predicated region
      $region45: #{se_separable_cbr_forward.3} parent=43 // pred_check
        %p469 = pneg %p187
      $region46: #{se_separable_cbr_forward.3} parent=43 // pred_check_branch
        %471 = sbr.rel (%p469) target = $region48
      $region47: #{se_separable_cbr_forward.3} parent=43 // pred_region
        %s472 = smul.u32 2, %s22
      $region48: #{se_separable_cbr_forward.3} parent=43 // pred_fallthru
        _
    $region44: #{se_separable_cbr_forward.3} parent=5 // pred_fallthru
      _
    %p473 = scmp.le.s32.totalorder 2, %s12
    // Predicated region
    $region49: #{se_separable_cbr_forward.3} parent=5 // pred_check
      %p474 = pneg %p473
    $region50: #{se_separable_cbr_forward.3} parent=5 // pred_check_branch
      %476 = sbr.rel (%p474) target = $region52
    $region51: #{se_separable_cbr_forward.3} parent=5 // pred_region
      %s477 = ssub.s32 %s12, 2
      // Predicated region
      $region53: #{se_separable_cbr_forward.3} parent=51 // pred_check
        %p478 = pneg %p193
      $region54: #{se_separable_cbr_forward.3} parent=51 // pred_check_branch
        %480 = sbr.rel (%p478) target = $region56
      $region55: #{se_separable_cbr_forward.3} parent=51 // pred_region
        %s481 = smul.u32 2, %s24
        %p482 = scmp.lt.s32.totalorder %s23, 1
        %s483 = scalar_select %p482, %s23, 1
        %p484 = scmp.lt.s32.totalorder %s481, 1
        %s485 = scalar_select %p484, %s481, 1
        %s486 = smul.addr %s483, 2
        %s487 = sadd.s32 %s485, %s486
        %s488 = smul.addr %s487, 8
        %s489 = scalar_lea.vmem %s6, %s488
      $region56: #{se_separable_cbr_forward.3} parent=51 // pred_fallthru
        _
    $region52: #{se_separable_cbr_forward.3} parent=5 // pred_fallthru
      _
  $region6: #{se_separable_cbr_forward.3} parent=0 // loop_footer
    %s16 = sadd.s32 1, %s12
  $region7: #{se_separable_cbr_forward.3} parent=0 // loop_footer_branch
    %11 = sbr.rel target = $region3
  $region8: #{se_separable_cbr_forward.3} parent=0 // loop_exit
    _

// kernel: se_separable_cbr_forward.2
$region0: #{se_separable_cbr_forward.2}
  #allocation0 [shape = 'u32[]', space=smem, size = 0x4, offset = 0x4, fixed_abs, tag = 'smem constant byte address 0x4 - core index']
  #allocation1 [shape = 'u32[144,128]{1,0:T(1,128)}', space=vmem, size = 0x12000, scoped, tag = 'internal scratch']
  %s0 = inlined_call_operand.vmem [shape: f32[2,4,18,18], index: 0, kind: input, shape index: {}]
  %s1 = inlined_call_operand.vmem [shape: f32[4,3,3], index: 1, kind: input, shape index: {}]
  %s2 = inlined_call_operand.vmem [shape: f32[2,4,16,16], index: 2, kind: output, shape index: {0}]
  %s3 = inlined_call_operand.vmem [shape: f32[2,4,1], index: 3, kind: output, shape index: {1}]
  %4 = xla_tuple %s2, %s3
  %s5 = sld [smem:[#allocation0]]
  $region49: #{se_separable_cbr_forward.2} parent=0
    _
  %s7 = ssub.s32 1, %s5
  %s8 = scalar_select 0, %s7, %s5
  loop: start=0, step=1, limit=4
  $region2: #{se_separable_cbr_forward.2} parent=0 // loop_pre_header
    _
  $region3: #{se_separable_cbr_forward.2} parent=0 // loop_header
    %s10 = sphi 0, %s14
    %p11 = scmp.ge.s32.totalorder %s10, 4
    %s17 = sphi 0, %s29
    %s18 = sphi 0, %s25
    %s19 = sphi 0, %s17
    %s20 = sphi 0, %s18
    %s21 = sphi 0, %s19
    %s22 = sphi 0, %s20
    %s34 = sphi 0, %s36
    %s37 = sphi 0, %s34
    %s38 = sphi 0, %s37
    %s54 = sphi 0, %s38
    %s60 = sphi 0, %s62
    %s63 = sphi 0, %s60
    %s64 = sphi 0, %s63
    %s80 = sphi 0, %s64
    %s88 = sphi 0, %s90
    %s91 = sphi 0, %s88
    %s92 = sphi 0, %s91
    %s108 = sphi 0, %s92
    %s116 = sphi 0, %s118
    %s119 = sphi 0, %s116
    %s120 = sphi 0, %s119
    %s136 = sphi 0, %s120
  $region4: #{se_separable_cbr_forward.2} parent=0 // loop_header_branch
    %13 = sbr.rel (%p11) target = $region8
  $region5: #{se_separable_cbr_forward.2} parent=0 // loop_body
    %s15 = ssub.s32 %s10, 1
    %s16 = ssub.s32 %s10, 2
    %s23 = sadd.s32 1, %s18
    %p24 = scmp.ge.s32.totalorder %s23, 1
    %s25 = scalar_select %p24, 0, %s23
    %s26 = sadd.s32 1, %s17
    %s27 = scalar_select %p24, %s26, %s17
    %p28 = scmp.ge.s32.totalorder %s27, 2
    %s29 = scalar_select %p28, 0, %s27
    %s30 = ssub.s32 %s17, %s29
    %s31 = ssub.s32 %s18, %s25
    %s32 = sor.u32 %s30, %s31
    %p33 = scmp.eq.s32.totalorder %s32, 0
    %s35 = sadd.s32 %s34, 1
    %s36 = scalar_select %p33, %s34, %s35
    %p39 = pneg %p33
    %p40 = scmp.eq.s32.totalorder %s10, 1
    %p41 = por %p39, %p40
    %p42 = scmp.ne.s32.totalorder %s34, %s37
    %p43 = scmp.eq.s32.totalorder %s10, 0
    %p44 = por %p42, %p43
    %p45 = scmp.ne.s32.totalorder %s34, %s37
    %p46 = scmp.eq.s32.totalorder %s15, 1
    %p47 = por %p45, %p46
    %p48 = scmp.ne.s32.totalorder %s37, %s38
    %p49 = scmp.eq.s32.totalorder %s15, 0
    %p50 = por %p48, %p49
    %p51 = scmp.ne.s32.totalorder %s37, %s38
    %p52 = scmp.eq.s32.totalorder %s16, 1
    %p53 = por %p51, %p52
    %p55 = scmp.ne.s32.totalorder %s38, %s54
    %p56 = scmp.eq.s32.totalorder %s16, 0
    %p57 = por %p55, %p56
    %s58 = ssub.s32 %s18, %s25
    %p59 = scmp.eq.s32.totalorder %s58, 0
    %s61 = sadd.s32 %s60, 1
    %s62 = scalar_select %p59, %s60, %s61
    %p65 = pneg %p59
    %p66 = scmp.eq.s32.totalorder %s10, 1
    %p67 = por %p65, %p66
    %p68 = scmp.ne.s32.totalorder %s60, %s63
    %p69 = scmp.eq.s32.totalorder %s10, 0
    %p70 = por %p68, %p69
    %p71 = scmp.ne.s32.totalorder %s60, %s63
    %p72 = scmp.eq.s32.totalorder %s15, 1
    %p73 = por %p71, %p72
    %p74 = scmp.ne.s32.totalorder %s63, %s64
    %p75 = scmp.eq.s32.totalorder %s15, 0
    %p76 = por %p74, %p75
    %p77 = scmp.ne.s32.totalorder %s63, %s64
    %p78 = scmp.eq.s32.totalorder %s16, 1
    %p79 = por %p77, %p78
    %p81 = scmp.ne.s32.totalorder %s64, %s80
    %p82 = scmp.eq.s32.totalorder %s16, 0
    %p83 = por %p81, %p82
    %s84 = ssub.s32 %s17, %s29
    %s85 = ssub.s32 %s18, %s25
    %s86 = sor.u32 %s84, %s85
    %p87 = scmp.eq.s32.totalorder %s86, 0
    %s89 = sadd.s32 %s88, 1
    %s90 = scalar_select %p87, %s88, %s89
    %p93 = pneg %p87
    %p94 = scmp.eq.s32.totalorder %s10, 1
    %p95 = por %p93, %p94
    %p96 = scmp.ne.s32.totalorder %s88, %s91
    %p97 = scmp.eq.s32.totalorder %s10, 0
    %p98 = por %p96, %p97
    %p99 = scmp.ne.s32.totalorder %s88, %s91
    %p100 = scmp.eq.s32.totalorder %s15, 1
    %p101 = por %p99, %p100
    %p102 = scmp.ne.s32.totalorder %s91, %s92
    %p103 = scmp.eq.s32.totalorder %s15, 0
    %p104 = por %p102, %p103
    %p105 = scmp.ne.s32.totalorder %s91, %s92
    %p106 = scmp.eq.s32.totalorder %s16, 1
    %p107 = por %p105, %p106
    %p109 = scmp.ne.s32.totalorder %s92, %s108
    %p110 = scmp.eq.s32.totalorder %s16, 0
    %p111 = por %p109, %p110
    %s112 = ssub.s32 %s17, %s29
    %s113 = ssub.s32 %s18, %s25
    %s114 = sor.u32 %s112, %s113
    %p115 = scmp.eq.s32.totalorder %s114, 0
    %s117 = sadd.s32 %s116, 1
    %s118 = scalar_select %p115, %s116, %s117
    %p121 = pneg %p115
    %p122 = scmp.eq.s32.totalorder %s10, 1
    %p123 = por %p121, %p122
    %p124 = scmp.ne.s32.totalorder %s116, %s119
    %p125 = scmp.eq.s32.totalorder %s10, 0
    %p126 = por %p124, %p125
    %p127 = scmp.ne.s32.totalorder %s116, %s119
    %p128 = scmp.eq.s32.totalorder %s15, 1
    %p129 = por %p127, %p128
    %p130 = scmp.ne.s32.totalorder %s119, %s120
    %p131 = scmp.eq.s32.totalorder %s15, 0
    %p132 = por %p130, %p131
    %p133 = scmp.ne.s32.totalorder %s119, %s120
    %p134 = scmp.eq.s32.totalorder %s16, 1
    %p135 = por %p133, %p134
    %p137 = scmp.ne.s32.totalorder %s120, %s136
    %p138 = scmp.eq.s32.totalorder %s16, 0
    %p139 = por %p137, %p138
    %p140 = scmp.le.s32.totalorder 1, %s10
    %p141 = scmp.lt.s32.totalorder %s10, 3
    %p142 = pnand %p140, %p141
    %p143 = pneg %p142
    // Predicated region
    $region9: #{se_separable_cbr_forward.2} parent=5 // pred_check
      _
    $region10: #{se_separable_cbr_forward.2} parent=5 // pred_check_branch
      %145 = sbr.rel (%p142) target = $region12
    $region11: #{se_separable_cbr_forward.2} parent=5 // pred_region
      %s146 = ssub.s32 %s10, 1
      // Predicated region
      $region13: #{se_separable_cbr_forward.2} parent=11 // pred_check
        %p147 = pneg %p76
      $region14: #{se_separable_cbr_forward.2} parent=11 // pred_check_branch
        %149 = sbr.rel (%p147) target = $region16
      $region15: #{se_separable_cbr_forward.2} parent=11 // pred_region
        %s150 = smul.u32 4, %s20
        %p151 = scmp.lt.s32.totalorder %s150, 3
        %s152 = scalar_select %p151, %s150, 3
        %s153 = smul.addr %s152, 4
        %s154 = scalar_lea.vmem %s1, %s153
        %s155 = smul.u32 4, %s20
      $region16: #{se_separable_cbr_forward.2} parent=11 // pred_fallthru
        _
    $region12: #{se_separable_cbr_forward.2} parent=5 // pred_fallthru
      _
    %p156 = scmp.lt.s32.totalorder %s10, 2
    // Predicated region
    $region17: #{se_separable_cbr_forward.2} parent=5 // pred_check
      %p157 = pneg %p156
    $region18: #{se_separable_cbr_forward.2} parent=5 // pred_check_branch
      %159 = sbr.rel (%p157) target = $region20
    $region19: #{se_separable_cbr_forward.2} parent=5 // pred_region
      // Predicated region
      $region21: #{se_separable_cbr_forward.2} parent=19 // pred_check
        %p160 = pneg %p44
      $region22: #{se_separable_cbr_forward.2} parent=19 // pred_check_branch
        %162 = sbr.rel (%p160) target = $region24
      $region23: #{se_separable_cbr_forward.2} parent=19 // pred_region
        %s163 = smul.u32 4, %s18
        %p164 = scmp.lt.s32.totalorder %s17, 1
        %s165 = scalar_select %p164, %s17, 1
        %p166 = scmp.lt.s32.totalorder %s163, 3
        %s167 = scalar_select %p166, %s163, 3
        %s168 = smul.addr %s167, 3
        %s169 = smul.addr %s165, 12
        %s170 = sadd.s32 %s168, %s169
        %s171 = smul.addr %s170, 8
        %s172 = scalar_lea.vmem %s0, %s171
        %s173 = smul.u32 4, %s18
      $region24: #{se_separable_cbr_forward.2} parent=19 // pred_fallthru
        _
    $region20: #{se_separable_cbr_forward.2} parent=5 // pred_fallthru
      _
    %p174 = scmp.le.s32.totalorder 1, %s10
    %p175 = scmp.lt.s32.totalorder %s10, 3
    %p176 = pnand %p174, %p175
    %p177 = pneg %p176
    // Predicated region
    $region25: #{se_separable_cbr_forward.2} parent=5 // pred_check
      _
    $region26: #{se_separable_cbr_forward.2} parent=5 // pred_check_branch
      %179 = sbr.rel (%p176) target = $region28
    $region27: #{se_separable_cbr_forward.2} parent=5 // pred_region
      %s180 = ssub.s32 %s10, 1
      %s181 = smul.u32 4, %s20
      %p182 = scmp.lt.s32.totalorder %s19, 1
      %s183 = scalar_select %p182, %s19, 1
      %p184 = scmp.lt.s32.totalorder %s181, 3
      %s185 = scalar_select %p184, %s181, 3
      %s186 = smul.addr %s185, 3
      %s187 = smul.addr %s183, 12
      %s188 = sadd.s32 %s186, %s187
      %s189 = smul.addr %s188, 8
      %s190 = scalar_lea.vmem %s0, %s189
      %p191 = pneg %p50
      %p192 = pneg %p47
      %s193 = smul.u32 4, %s20
      %p194 = scmp.lt.s32.totalorder %s193, 3
      %s195 = scalar_select %p194, %s193, 3
      %s196 = smul.addr %s195, 4
      %s197 = scalar_lea.vmem %s1, %s196
      %p198 = pneg %p76
      %p199 = pneg %p73
      %p200 = pneg %p104
      %p201 = pneg %p101
      %s202 = smul.u32 4, %s20
      %p203 = scmp.lt.s32.totalorder %s19, 1
      %s204 = scalar_select %p203, %s19, 1
      %p205 = scmp.lt.s32.totalorder %s202, 3
      %s206 = scalar_select %p205, %s202, 3
      %s207 = smul.addr %s206, 2
      %s208 = smul.addr %s204, 8
      %s209 = sadd.s32 %s207, %s208
      %s210 = smul.addr %s209, 8
      %s211 = scalar_lea.vmem %s2, %s210
      %p212 = pneg %p132
      %p213 = pneg %p129
      %p214 = scmp.lt.s32.totalorder %s19, 1
      %s215 = scalar_select %p214, %s19, 1
      %p216 = scmp.lt.s32.totalorder %s20, 0
      %s217 = scalar_select %p216, %s20, 0
      %s218 = sadd.s32 %s217, %s215
      %s219 = smul.addr %s218, 4
      %s220 = scalar_lea.vmem %s3, %s219
      %s221 = smul.u32 4, %s20
      %p222 = scmp.lt.s32.totalorder %s19, 1
      %s223 = scalar_select %p222, %s19, 1
      %p224 = scmp.lt.s32.totalorder %s221, 3
      %s225 = scalar_select %p224, %s221, 3
      %s226 = smul.addr %s225, 3
      %s227 = smul.addr %s223, 12
      %s228 = sadd.s32 %s226, %s227
      %s229 = smul.addr %s228, 8
      %s230 = scalar_lea.vmem %s0, %s229
      %s231 = smul.u32 4, %s20
      %s232 = smul.u32 4, %s20
      %p233 = scmp.lt.s32.totalorder %s232, 3
      %s234 = scalar_select %p233, %s232, 3
      %s235 = smul.addr %s234, 4
      %s236 = scalar_lea.vmem %s1, %s235
      %s237 = smul.u32 4, %s20
      %s238 = smul.u32 4, %s20
      %p239 = scmp.lt.s32.totalorder %s19, 1
      %s240 = scalar_select %p239, %s19, 1
      %p241 = scmp.lt.s32.totalorder %s238, 3
      %s242 = scalar_select %p241, %s238, 3
      %s243 = smul.addr %s242, 2
      %s244 = smul.addr %s240, 8
      %s245 = sadd.s32 %s243, %s244
      %s246 = smul.addr %s245, 8
      %s247 = scalar_lea.vmem %s2, %s246
      %s248 = smul.u32 4, %s20
      %p249 = scmp.lt.s32.totalorder %s19, 1
      %s250 = scalar_select %p249, %s19, 1
      %p251 = scmp.lt.s32.totalorder %s20, 0
      %s252 = scalar_select %p251, %s20, 0
      %s253 = sadd.s32 %s252, %s250
      %s254 = smul.addr %s253, 4
      %s255 = scalar_lea.vmem %s3, %s254
      %v256 = vld [vmem:[%s230] sm:$0xff]
      %v257 = vld [vmem:[%s230 + $0x8] sm:$0xff]
      %v258 = vld [vmem:[%s230 + $0x10] sm:$0x3]
      %v259 = vld [vmem:[%s230 + $0x18] sm:$0xff]
      %v260 = vld [vmem:[%s230 + $0x20] sm:$0xff]
      %v261 = vld [vmem:[%s230 + $0x28] sm:$0x3]
      %v262 = vld [vmem:[%s230 + $0x30] sm:$0xff]
      %v263 = vld [vmem:[%s230 + $0x38] sm:$0xff]
      %v264 = vld [vmem:[%s230 + $0x40] sm:$0x3]
      %v265 = vld [vmem:[%s230 + $0x48] sm:$0xff]
      %v266 = vld [vmem:[%s230 + $0x50] sm:$0xff]
      %v267 = vld [vmem:[%s230 + $0x58] sm:$0x3]
      %v268 = vld [vmem:[%s236] sm:$0x7]
      %v269 = vld [vmem:[%s236 + $0x4] sm:$0x7]
      %v270 = vld [vmem:[%s236 + $0x8] sm:$0x7]
      %v271 = vld [vmem:[%s236 + $0xc] sm:$0x7]
      %s273 = vtos %v268
      %v274 = vstv %s273
      %s277 = vtos %v269
      %v278 = vstv %s277
      %s281 = vtos %v270
      %v282 = vstv %s281
      %s285 = vtos %v271
      %v286 = vstv %s285
      %v288 = vmul.f32 %v256, %v274
      %v289 = vmul.f32 %v259, %v278
      %v290 = vmul.f32 %v262, %v282
      %v291 = vmul.f32 %v265, %v286
      %v292 = vadd.f32 %v288, 0.0
      %v293 = vadd.f32 %v289, 0.0
      %v294 = vadd.f32 %v290, 0.0
      %v295 = vadd.f32 %v291, 0.0
      %296 = vrot.lane.b32.xlu0 %v268, 127
      %v297 = vpop.permute.xlu0 %296
      %298 = vrot.lane.b32.xlu0 %v269, 127
      %v299 = vpop.permute.xlu0 %298
      %300 = vrot.lane.b32.xlu0 %v270, 127
      %v301 = vpop.permute.xlu0 %300
      %302 = vrot.lane.b32.xlu0 %v271, 127
      %v303 = vpop.permute.xlu0 %302
      %s304 = vtos %v297
      %v305 = vstv %s304
      %s307 = vtos %v299
      %v308 = vstv %s307
      %s310 = vtos %v301
      %v311 = vstv %s310
      %s313 = vtos %v303
      %v314 = vstv %s313
      %v316 = vmul.f32 %v256, %v305
      %v317 = vmul.f32 %v259, %v308
      %v318 = vmul.f32 %v262, %v311
      %v319 = vmul.f32 %v265, %v314
      %324 = vrot.lane.b32.xlu0 %v316, 127
      %v325 = vpop.permute.xlu0 %324
      %326 = vrot.lane.b32.xlu0 %v317, 127
      %v327 = vpop.permute.xlu0 %326
      %328 = vrot.lane.b32.xlu0 %v318, 127
      %v329 = vpop.permute.xlu0 %328
      %330 = vrot.lane.b32.xlu0 %v319, 127
      %v331 = vpop.permute.xlu0 %330
      %v336 = vadd.f32 %v292, %v325
      %v337 = vadd.f32 %v293, %v327
      %v338 = vadd.f32 %v294, %v329
      %v339 = vadd.f32 %v295, %v331
      %340 = vrot.lane.b32.xlu0 %v268, 126
      %v341 = vpop.permute.xlu0 %340
      %342 = vrot.lane.b32.xlu0 %v269, 126
      %v343 = vpop.permute.xlu0 %342
      %344 = vrot.lane.b32.xlu0 %v270, 126
      %v345 = vpop.permute.xlu0 %344
      %346 = vrot.lane.b32.xlu0 %v271, 126
      %v347 = vpop.permute.xlu0 %346
      %s348 = vtos %v341
      %v349 = vstv %s348
      %s351 = vtos %v343
      %v352 = vstv %s351
      %s354 = vtos %v345
      %v355 = vstv %s354
      %s357 = vtos %v347
      %v358 = vstv %s357
      %v360 = vmul.f32 %v256, %v349
      %v361 = vmul.f32 %v259, %v352
      %v362 = vmul.f32 %v262, %v355
      %v363 = vmul.f32 %v265, %v358
      %368 = vrot.lane.b32.xlu0 %v360, 126
      %v369 = vpop.permute.xlu0 %368
      %370 = vrot.lane.b32.xlu0 %v361, 126
      %v371 = vpop.permute.xlu0 %370
      %372 = vrot.lane.b32.xlu0 %v362, 126
      %v373 = vpop.permute.xlu0 %372
      %374 = vrot.lane.b32.xlu0 %v363, 126
      %v375 = vpop.permute.xlu0 %374
      %v380 = vadd.f32 %v336, %v369
      %v381 = vadd.f32 %v337, %v371
      %v382 = vadd.f32 %v338, %v373
      %v383 = vadd.f32 %v339, %v375
      %v384 = vrot.slane %v268, 1
      %v385 = vrot.slane %v269, 1
      %v386 = vrot.slane %v270, 1
      %v387 = vrot.slane %v271, 1
      %s388 = vtos %v384
      %v389 = vstv %s388
      %s391 = vtos %v385
      %v392 = vstv %s391
      %s394 = vtos %v386
      %v395 = vstv %s394
      %s397 = vtos %v387
      %v398 = vstv %s397
      %v400 = vmul.f32 %v256, %v389
      %v401 = vmul.f32 %v257, %v389
      %v402 = vmul.f32 %v259, %v392
      %v403 = vmul.f32 %v260, %v392
      %v404 = vmul.f32 %v262, %v395
      %v405 = vmul.f32 %v263, %v395
      %v406 = vmul.f32 %v265, %v398
      %v407 = vmul.f32 %v266, %v398
      %vm416 = vcmask 1046528
      %v417 = vrot.slane %v400, 1
      %v418 = vrot.slane %v401, 1
      %v419 = vsel %vm416, %v417, %v418
      %v420 = vrot.slane %v402, 1
      %v421 = vrot.slane %v403, 1
      %v422 = vsel %vm416, %v420, %v421
      %v423 = vrot.slane %v404, 1
      %v424 = vrot.slane %v405, 1
      %v425 = vsel %vm416, %v423, %v424
      %v426 = vrot.slane %v406, 1
      %v427 = vrot.slane %v407, 1
      %v428 = vsel %vm416, %v426, %v427
      %v433 = vadd.f32 %v380, %v419
      %v434 = vadd.f32 %v381, %v422
      %v435 = vadd.f32 %v382, %v425
      %v436 = vadd.f32 %v383, %v428
      %437 = vrot.lane.b32.xlu0 %v384, 127
      %v438 = vpop.permute.xlu0 %437
      %439 = vrot.lane.b32.xlu0 %v385, 127
      %v440 = vpop.permute.xlu0 %439
      %441 = vrot.lane.b32.xlu0 %v386, 127
      %v442 = vpop.permute.xlu0 %441
      %443 = vrot.lane.b32.xlu0 %v387, 127
      %v444 = vpop.permute.xlu0 %443
      %s445 = vtos %v438
      %v446 = vstv %s445
      %s448 = vtos %v440
      %v449 = vstv %s448
      %s451 = vtos %v442
      %v452 = vstv %s451
      %s454 = vtos %v444
      %v455 = vstv %s454
      %v457 = vmul.f32 %v256, %v446
      %v458 = vmul.f32 %v257, %v446
      %v459 = vmul.f32 %v259, %v449
      %v460 = vmul.f32 %v260, %v449
      %v461 = vmul.f32 %v262, %v452
      %v462 = vmul.f32 %v263, %v452
      %v463 = vmul.f32 %v265, %v455
      %v464 = vmul.f32 %v266, %v455
      %v473 = vrot.slane %v457, 1
      %v474 = vrot.slane %v458, 1
      %v475 = vsel %vm416, %v473, %v474
      %v476 = vrot.slane %v459, 1
      %v477 = vrot.slane %v460, 1
      %v478 = vsel %vm416, %v476, %v477
      %v479 = vrot.slane %v461, 1
      %v480 = vrot.slane %v462, 1
      %v481 = vsel %vm416, %v479, %v480
      %v482 = vrot.slane %v463, 1
      %v483 = vrot.slane %v464, 1
      %v484 = vsel %vm416, %v482, %v483
      %485 = vrot.lane.b32.xlu0 %v475, 127
      %v486 = vpop.permute.xlu0 %485
      %487 = vrot.lane.b32.xlu0 %v478, 127
      %v488 = vpop.permute.xlu0 %487
      %489 = vrot.lane.b32.xlu0 %v481, 127
      %v490 = vpop.permute.xlu0 %489
      %491 = vrot.lane.b32.xlu0 %v484, 127
      %v492 = vpop.permute.xlu0 %491
      %v497 = vadd.f32 %v433, %v486
      %v498 = vadd.f32 %v434, %v488
      %v499 = vadd.f32 %v435, %v490
      %v500 = vadd.f32 %v436, %v492
      %501 = vrot.lane.b32.xlu0 %v384, 126
      %v502 = vpop.permute.xlu0 %501
      %503 = vrot.lane.b32.xlu0 %v385, 126
      %v504 = vpop.permute.xlu0 %503
      %505 = vrot.lane.b32.xlu0 %v386, 126
      %v506 = vpop.permute.xlu0 %505
      %507 = vrot.lane.b32.xlu0 %v387, 126
      %v508 = vpop.permute.xlu0 %507
      %s509 = vtos %v502
      %v510 = vstv %s509
      %s512 = vtos %v504
      %v513 = vstv %s512
      %s515 = vtos %v506
      %v516 = vstv %s515
      %s518 = vtos %v508
      %v519 = vstv %s518
      %v521 = vmul.f32 %v256, %v510
      %v522 = vmul.f32 %v257, %v510
      %v523 = vmul.f32 %v259, %v513
      %v524 = vmul.f32 %v260, %v513
      %v525 = vmul.f32 %v262, %v516
      %v526 = vmul.f32 %v263, %v516
      %v527 = vmul.f32 %v265, %v519
      %v528 = vmul.f32 %v266, %v519
      %v537 = vrot.slane %v521, 1
      %v538 = vrot.slane %v522, 1
      %v539 = vsel %vm416, %v537, %v538
      %v540 = vrot.slane %v523, 1
      %v541 = vrot.slane %v524, 1
      %v542 = vsel %vm416, %v540, %v541
      %v543 = vrot.slane %v525, 1
      %v544 = vrot.slane %v526, 1
      %v545 = vsel %vm416, %v543, %v544
      %v546 = vrot.slane %v527, 1
      %v547 = vrot.slane %v528, 1
      %v548 = vsel %vm416, %v546, %v547
      %549 = vrot.lane.b32.xlu0 %v539, 126
      %v550 = vpop.permute.xlu0 %549
      %551 = vrot.lane.b32.xlu0 %v542, 126
      %v552 = vpop.permute.xlu0 %551
      %553 = vrot.lane.b32.xlu0 %v545, 126
      %v554 = vpop.permute.xlu0 %553
      %555 = vrot.lane.b32.xlu0 %v548, 126
      %v556 = vpop.permute.xlu0 %555
      %v561 = vadd.f32 %v497, %v550
      %v562 = vadd.f32 %v498, %v552
      %v563 = vadd.f32 %v499, %v554
      %v564 = vadd.f32 %v500, %v556
      %v565 = vrot.slane %v268, 2
      %v566 = vrot.slane %v269, 2
      %v567 = vrot.slane %v270, 2
      %v568 = vrot.slane %v271, 2
      %s569 = vtos %v565
      %v570 = vstv %s569
      %s572 = vtos %v566
      %v573 = vstv %s572
      %s575 = vtos %v567
      %v576 = vstv %s575
      %s578 = vtos %v568
      %v579 = vstv %s578
      %v581 = vmul.f32 %v256, %v570
      %v582 = vmul.f32 %v257, %v570
      %v583 = vmul.f32 %v259, %v573
      %v584 = vmul.f32 %v260, %v573
      %v585 = vmul.f32 %v262, %v576
      %v586 = vmul.f32 %v263, %v576
      %v587 = vmul.f32 %v265, %v579
      %v588 = vmul.f32 %v266, %v579
      %vm597 = vcmask 1045504
      %v598 = vrot.slane %v581, 2
      %v599 = vrot.slane %v582, 2
      %v600 = vsel %vm597, %v598, %v599
      %v601 = vrot.slane %v583, 2
      %v602 = vrot.slane %v584, 2
      %v603 = vsel %vm597, %v601, %v602
      %v604 = vrot.slane %v585, 2
      %v605 = vrot.slane %v586, 2
      %v606 = vsel %vm597, %v604, %v605
      %v607 = vrot.slane %v587, 2
      %v608 = vrot.slane %v588, 2
      %v609 = vsel %vm597, %v607, %v608
      %v614 = vadd.f32 %v561, %v600
      %v615 = vadd.f32 %v562, %v603
      %v616 = vadd.f32 %v563, %v606
      %v617 = vadd.f32 %v564, %v609
      %618 = vrot.lane.b32.xlu0 %v565, 127
      %v619 = vpop.permute.xlu0 %618
      %620 = vrot.lane.b32.xlu0 %v566, 127
      %v621 = vpop.permute.xlu0 %620
      %622 = vrot.lane.b32.xlu0 %v567, 127
      %v623 = vpop.permute.xlu0 %622
      %624 = vrot.lane.b32.xlu0 %v568, 127
      %v625 = vpop.permute.xlu0 %624
      %s626 = vtos %v619
      %v627 = vstv %s626
      %s629 = vtos %v621
      %v630 = vstv %s629
      %s632 = vtos %v623
      %v633 = vstv %s632
      %s635 = vtos %v625
      %v636 = vstv %s635
      %v638 = vmul.f32 %v256, %v627
      %v639 = vmul.f32 %v257, %v627
      %v640 = vmul.f32 %v259, %v630
      %v641 = vmul.f32 %v260, %v630
      %v642 = vmul.f32 %v262, %v633
      %v643 = vmul.f32 %v263, %v633
      %v644 = vmul.f32 %v265, %v636
      %v645 = vmul.f32 %v266, %v636
      %v654 = vrot.slane %v638, 2
      %v655 = vrot.slane %v639, 2
      %v656 = vsel %vm597, %v654, %v655
      %v657 = vrot.slane %v640, 2
      %v658 = vrot.slane %v641, 2
      %v659 = vsel %vm597, %v657, %v658
      %v660 = vrot.slane %v642, 2
      %v661 = vrot.slane %v643, 2
      %v662 = vsel %vm597, %v660, %v661
      %v663 = vrot.slane %v644, 2
      %v664 = vrot.slane %v645, 2
      %v665 = vsel %vm597, %v663, %v664
      %666 = vrot.lane.b32.xlu0 %v656, 127
      %v667 = vpop.permute.xlu0 %666
      %668 = vrot.lane.b32.xlu0 %v659, 127
      %v669 = vpop.permute.xlu0 %668
      %670 = vrot.lane.b32.xlu0 %v662, 127
      %v671 = vpop.permute.xlu0 %670
      %672 = vrot.lane.b32.xlu0 %v665, 127
      %v673 = vpop.permute.xlu0 %672
      %v678 = vadd.f32 %v614, %v667
      %v679 = vadd.f32 %v615, %v669
      %v680 = vadd.f32 %v616, %v671
      %v681 = vadd.f32 %v617, %v673
      %682 = vrot.lane.b32.xlu0 %v565, 126
      %v683 = vpop.permute.xlu0 %682
      %684 = vrot.lane.b32.xlu0 %v566, 126
      %v685 = vpop.permute.xlu0 %684
      %686 = vrot.lane.b32.xlu0 %v567, 126
      %v687 = vpop.permute.xlu0 %686
      %688 = vrot.lane.b32.xlu0 %v568, 126
      %v689 = vpop.permute.xlu0 %688
      %s690 = vtos %v683
      %v691 = vstv %s690
      %s693 = vtos %v685
      %v694 = vstv %s693
      %s696 = vtos %v687
      %v697 = vstv %s696
      %s699 = vtos %v689
      %v700 = vstv %s699
      %v702 = vmul.f32 %v256, %v691
      %v703 = vmul.f32 %v257, %v691
      %v704 = vmul.f32 %v259, %v694
      %v705 = vmul.f32 %v260, %v694
      %v706 = vmul.f32 %v262, %v697
      %v707 = vmul.f32 %v263, %v697
      %v708 = vmul.f32 %v265, %v700
      %v709 = vmul.f32 %v266, %v700
      %v718 = vrot.slane %v702, 2
      %v719 = vrot.slane %v703, 2
      %v720 = vsel %vm597, %v718, %v719
      %v721 = vrot.slane %v704, 2
      %v722 = vrot.slane %v705, 2
      %v723 = vsel %vm597, %v721, %v722
      %v724 = vrot.slane %v706, 2
      %v725 = vrot.slane %v707, 2
      %v726 = vsel %vm597, %v724, %v725
      %v727 = vrot.slane %v708, 2
      %v728 = vrot.slane %v709, 2
      %v729 = vsel %vm597, %v727, %v728
      %730 = vrot.lane.b32.xlu0 %v720, 126
      %v731 = vpop.permute.xlu0 %730
      %732 = vrot.lane.b32.xlu0 %v723, 126
      %v733 = vpop.permute.xlu0 %732
      %734 = vrot.lane.b32.xlu0 %v726, 126
      %v735 = vpop.permute.xlu0 %734
      %736 = vrot.lane.b32.xlu0 %v729, 126
      %v737 = vpop.permute.xlu0 %736
      %v742 = vadd.f32 %v678, %v731
      %v743 = vadd.f32 %v679, %v733
      %v744 = vadd.f32 %v680, %v735
      %v745 = vadd.f32 %v681, %v737
      %vm746 = vcmask 130048
      %747 = vst.msk [vmem:[%s247] sm:$0xff] %vm746, %v742
      %748 = vst.msk [vmem:[%s247 + $0x10] sm:$0xff] %vm746, %v743
      %749 = vst.msk [vmem:[%s247 + $0x20] sm:$0xff] %vm746, %v744
      %750 = vst.msk [vmem:[%s247 + $0x30] sm:$0xff] %vm746, %v745
      %v751 = vsel %vm746, %v742, 0.0
      %752 = vadd.xlane.f32.xlu0 %v751
      %v753 = vpop.xlane.xlu0 %752
      %v754 = vsel %vm746, %v743, 0.0
      %755 = vadd.xlane.f32.xlu0 %v754
      %v756 = vpop.xlane.xlu0 %755
      %v757 = vsel %vm746, %v744, 0.0
      %758 = vadd.xlane.f32.xlu0 %v757
      %v759 = vpop.xlane.xlu0 %758
      %v760 = vsel %vm746, %v745, 0.0
      %761 = vadd.xlane.f32.xlu0 %v760
      %v762 = vpop.xlane.xlu0 %761
      %v767 = vlaneseq
      %v768 = vand.u32 %v767, 127
      %v769 = vlaneseq
      %v770 = vshrl.u32 %v769, 7
      %v771 = vsub.s32 %v768, %v770
      %v772 = vrot.slane %v753, %v771
      %v773 = vlaneseq
      %v774 = vshrl.u32 %v773, 7
      %v775 = vsub.s32 %v768, %v774
      %v776 = vrot.slane %v756, %v775
      %v777 = vlaneseq
      %v778 = vshrl.u32 %v777, 7
      %v779 = vsub.s32 %v768, %v778
      %v780 = vrot.slane %v759, %v779
      %v781 = vlaneseq
      %v782 = vshrl.u32 %v781, 7
      %v783 = vsub.s32 %v768, %v782
      %v784 = vrot.slane %v762, %v783
      %vm785 = vcmask 1041409
      %v786 = vsel %vm785, %v776, %v772
      %vm787 = vcmask 1042434
      %v788 = vsel %vm787, %v780, %v786
      %vm789 = vcmask 1043459
      %v790 = vsel %vm789, %v784, %v788
      %vm792 = vcmask 60416
      %v793 = vsel %vm792, %v790, 0.0
      %794 = vadd.xlane.f32.xlu0 %v793
      %v795 = vpop.xlane.xlu0 %794
      %v796 = vadd.f32 %v795, 0.0
      %v797 = vmul.f32 %v257, %v274
      %v798 = vmul.f32 %v260, %v278
      %v799 = vmul.f32 %v263, %v282
      %v800 = vmul.f32 %v266, %v286
      %v801 = vadd.f32 %v797, 0.0
      %v802 = vadd.f32 %v798, 0.0
      %v803 = vadd.f32 %v799, 0.0
      %v804 = vadd.f32 %v800, 0.0
      %v805 = vmul.f32 %v257, %v305
      %v806 = vmul.f32 %v260, %v308
      %v807 = vmul.f32 %v263, %v311
      %v808 = vmul.f32 %v266, %v314
      %813 = vrot.lane.b32.xlu0 %v805, 127
      %v814 = vpop.permute.xlu0 %813
      %815 = vrot.lane.b32.xlu0 %v806, 127
      %v816 = vpop.permute.xlu0 %815
      %817 = vrot.lane.b32.xlu0 %v807, 127
      %v818 = vpop.permute.xlu0 %817
      %819 = vrot.lane.b32.xlu0 %v808, 127
      %v820 = vpop.permute.xlu0 %819
      %v825 = vadd.f32 %v801, %v814
      %v826 = vadd.f32 %v802, %v816
      %v827 = vadd.f32 %v803, %v818
      %v828 = vadd.f32 %v804, %v820
      %v829 = vmul.f32 %v257, %v349
      %v830 = vmul.f32 %v260, %v352
      %v831 = vmul.f32 %v263, %v355
      %v832 = vmul.f32 %v266, %v358
      %837 = vrot.lane.b32.xlu0 %v829, 126
      %v838 = vpop.permute.xlu0 %837
      %839 = vrot.lane.b32.xlu0 %v830, 126
      %v840 = vpop.permute.xlu0 %839
      %841 = vrot.lane.b32.xlu0 %v831, 126
      %v842 = vpop.permute.xlu0 %841
      %843 = vrot.lane.b32.xlu0 %v832, 126
      %v844 = vpop.permute.xlu0 %843
      %v849 = vadd.f32 %v825, %v838
      %v850 = vadd.f32 %v826, %v840
      %v851 = vadd.f32 %v827, %v842
      %v852 = vadd.f32 %v828, %v844
      %v853 = vmul.f32 %v258, %v389
      %v854 = vmul.f32 %v261, %v392
      %v855 = vmul.f32 %v264, %v395
      %v856 = vmul.f32 %v267, %v398
      %v861 = vrot.slane %v853, 1
      %v862 = vsel %vm416, %v418, %v861
      %v863 = vrot.slane %v854, 1
      %v864 = vsel %vm416, %v421, %v863
      %v865 = vrot.slane %v855, 1
      %v866 = vsel %vm416, %v424, %v865
      %v867 = vrot.slane %v856, 1
      %v868 = vsel %vm416, %v427, %v867
      %v873 = vadd.f32 %v849, %v862
      %v874 = vadd.f32 %v850, %v864
      %v875 = vadd.f32 %v851, %v866
      %v876 = vadd.f32 %v852, %v868
      %v877 = vmul.f32 %v258, %v446
      %v878 = vmul.f32 %v261, %v449
      %v879 = vmul.f32 %v264, %v452
      %v880 = vmul.f32 %v267, %v455
      %v885 = vrot.slane %v877, 1
      %v886 = vsel %vm416, %v474, %v885
      %v887 = vrot.slane %v878, 1
      %v888 = vsel %vm416, %v477, %v887
      %v889 = vrot.slane %v879, 1
      %v890 = vsel %vm416, %v480, %v889
      %v891 = vrot.slane %v880, 1
      %v892 = vsel %vm416, %v483, %v891
      %893 = vrot.lane.b32.xlu0 %v886, 127
      %v894 = vpop.permute.xlu0 %893
      %895 = vrot.lane.b32.xlu0 %v888, 127
      %v896 = vpop.permute.xlu0 %895
      %897 = vrot.lane.b32.xlu0 %v890, 127
      %v898 = vpop.permute.xlu0 %897
      %899 = vrot.lane.b32.xlu0 %v892, 127
      %v900 = vpop.permute.xlu0 %899
      %v905 = vadd.f32 %v873, %v894
      %v906 = vadd.f32 %v874, %v896
      %v907 = vadd.f32 %v875, %v898
      %v908 = vadd.f32 %v876, %v900
      %v909 = vmul.f32 %v258, %v510
      %v910 = vmul.f32 %v261, %v513
      %v911 = vmul.f32 %v264, %v516
      %v912 = vmul.f32 %v267, %v519
      %v917 = vrot.slane %v909, 1
      %v918 = vsel %vm416, %v538, %v917
      %v919 = vrot.slane %v910, 1
      %v920 = vsel %vm416, %v541, %v919
      %v921 = vrot.slane %v911, 1
      %v922 = vsel %vm416, %v544, %v921
      %v923 = vrot.slane %v912, 1
      %v924 = vsel %vm416, %v547, %v923
      %925 = vrot.lane.b32.xlu0 %v918, 126
      %v926 = vpop.permute.xlu0 %925
      %927 = vrot.lane.b32.xlu0 %v920, 126
      %v928 = vpop.permute.xlu0 %927
      %929 = vrot.lane.b32.xlu0 %v922, 126
      %v930 = vpop.permute.xlu0 %929
      %931 = vrot.lane.b32.xlu0 %v924, 126
      %v932 = vpop.permute.xlu0 %931
      %v937 = vadd.f32 %v905, %v926
      %v938 = vadd.f32 %v906, %v928
      %v939 = vadd.f32 %v907, %v930
      %v940 = vadd.f32 %v908, %v932
      %v941 = vmul.f32 %v258, %v570
      %v942 = vmul.f32 %v261, %v573
      %v943 = vmul.f32 %v264, %v576
      %v944 = vmul.f32 %v267, %v579
      %v949 = vrot.slane %v941, 2
      %v950 = vsel %vm597, %v599, %v949
      %v951 = vrot.slane %v942, 2
      %v952 = vsel %vm597, %v602, %v951
      %v953 = vrot.slane %v943, 2
      %v954 = vsel %vm597, %v605, %v953
      %v955 = vrot.slane %v944, 2
      %v956 = vsel %vm597, %v608, %v955
      %v961 = vadd.f32 %v937, %v950
      %v962 = vadd.f32 %v938, %v952
      %v963 = vadd.f32 %v939, %v954
      %v964 = vadd.f32 %v940, %v956
      %v965 = vmul.f32 %v258, %v627
      %v966 = vmul.f32 %v261, %v630
      %v967 = vmul.f32 %v264, %v633
      %v968 = vmul.f32 %v267, %v636
      %v973 = vrot.slane %v965, 2
      %v974 = vsel %vm597, %v655, %v973
      %v975 = vrot.slane %v966, 2
      %v976 = vsel %vm597, %v658, %v975
      %v977 = vrot.slane %v967, 2
      %v978 = vsel %vm597, %v661, %v977
      %v979 = vrot.slane %v968, 2
      %v980 = vsel %vm597, %v664, %v979
      %981 = vrot.lane.b32.xlu0 %v974, 127
      %v982 = vpop.permute.xlu0 %981
      %983 = vrot.lane.b32.xlu0 %v976, 127
      %v984 = vpop.permute.xlu0 %983
      %985 = vrot.lane.b32.xlu0 %v978, 127
      %v986 = vpop.permute.xlu0 %985
      %987 = vrot.lane.b32.xlu0 %v980, 127
      %v988 = vpop.permute.xlu0 %987
      %v993 = vadd.f32 %v961, %v982
      %v994 = vadd.f32 %v962, %v984
      %v995 = vadd.f32 %v963, %v986
      %v996 = vadd.f32 %v964, %v988
      %v997 = vmul.f32 %v258, %v691
      %v998 = vmul.f32 %v261, %v694
      %v999 = vmul.f32 %v264, %v697
      %v1000 = vmul.f32 %v267, %v700
      %v1005 = vrot.slane %v997, 2
      %v1006 = vsel %vm597, %v719, %v1005
      %v1007 = vrot.slane %v998, 2
      %v1008 = vsel %vm597, %v722, %v1007
      %v1009 = vrot.slane %v999, 2
      %v1010 = vsel %vm597, %v725, %v1009
      %v1011 = vrot.slane %v1000, 2
      %v1012 = vsel %vm597, %v728, %v1011
      %1013 = vrot.lane.b32.xlu0 %v1006, 126
      %v1014 = vpop.permute.xlu0 %1013
      %1015 = vrot.lane.b32.xlu0 %v1008, 126
      %v1016 = vpop.permute.xlu0 %1015
      %1017 = vrot.lane.b32.xlu0 %v1010, 126
      %v1018 = vpop.permute.xlu0 %1017
      %1019 = vrot.lane.b32.xlu0 %v1012, 126
      %v1020 = vpop.permute.xlu0 %1019
      %v1025 = vadd.f32 %v993, %v1014
      %v1026 = vadd.f32 %v994, %v1016
      %v1027 = vadd.f32 %v995, %v1018
      %v1028 = vadd.f32 %v996, %v1020
      %1029 = vst.msk [vmem:[%s247 + $0x8] sm:$0xff] %vm746, %v1025
      %1030 = vst.msk [vmem:[%s247 + $0x18] sm:$0xff] %vm746, %v1026
      %1031 = vst.msk [vmem:[%s247 + $0x28] sm:$0xff] %vm746, %v1027
      %1032 = vst.msk [vmem:[%s247 + $0x38] sm:$0xff] %vm746, %v1028
      %v1033 = vsel %vm746, %v1025, 0.0
      %1034 = vadd.xlane.f32.xlu0 %v1033
      %v1035 = vpop.xlane.xlu0 %1034
      %v1036 = vsel %vm746, %v1026, 0.0
      %1037 = vadd.xlane.f32.xlu0 %v1036
      %v1038 = vpop.xlane.xlu0 %1037
      %v1039 = vsel %vm746, %v1027, 0.0
      %1040 = vadd.xlane.f32.xlu0 %v1039
      %v1041 = vpop.xlane.xlu0 %1040
      %v1042 = vsel %vm746, %v1028, 0.0
      %1043 = vadd.xlane.f32.xlu0 %v1042
      %v1044 = vpop.xlane.xlu0 %1043
      %v1049 = vlaneseq
      %v1050 = vshrl.u32 %v1049, 7
      %v1051 = vsub.s32 %v768, %v1050
      %v1052 = vrot.slane %v1035, %v1051
      %v1053 = vlaneseq
      %v1054 = vshrl.u32 %v1053, 7
      %v1055 = vsub.s32 %v768, %v1054
      %v1056 = vrot.slane %v1038, %v1055
      %v1057 = vlaneseq
      %v1058 = vshrl.u32 %v1057, 7
      %v1059 = vsub.s32 %v768, %v1058
      %v1060 = vrot.slane %v1041, %v1059
      %v1061 = vlaneseq
      %v1062 = vshrl.u32 %v1061, 7
      %v1063 = vsub.s32 %v768, %v1062
      %v1064 = vrot.slane %v1044, %v1063
      %v1065 = vsel %vm785, %v1056, %v1052
      %v1066 = vsel %vm787, %v1060, %v1065
      %v1067 = vsel %vm789, %v1064, %v1066
      %v1069 = vsel %vm792, %v1067, 0.0
      %1070 = vadd.xlane.f32.xlu0 %v1069
      %v1071 = vpop.xlane.xlu0 %1070
      %v1072 = vadd.f32 %v796, %v1071
      %vm1073 = vcmask 3072
      %1074 = vst.msk [vmem:[%s255] sm:$0xf] %vm1073, %v1072
      %s1075 = smul.u32 4, %s20
      %p1076 = scmp.lt.s32.totalorder %s19, 1
      %s1077 = scalar_select %p1076, %s19, 1
      %p1078 = scmp.lt.s32.totalorder %s1075, 3
      %s1079 = scalar_select %p1078, %s1075, 3
      %s1080 = smul.addr %s1079, 2
      %s1081 = smul.addr %s1077, 8
      %s1082 = sadd.s32 %s1080, %s1081
      %s1083 = smul.addr %s1082, 8
      %s1084 = scalar_lea.vmem %s2, %s1083
      %p1085 = scmp.lt.s32.totalorder %s19, 1
      %s1086 = scalar_select %p1085, %s19, 1
      %p1087 = scmp.lt.s32.totalorder %s20, 0
      %s1088 = scalar_select %p1087, %s20, 0
      %s1089 = sadd.s32 %s1088, %s1086
      %s1090 = smul.addr %s1089, 4
      %s1091 = scalar_lea.vmem %s3, %s1090
      // Predicated region
      $region29: #{se_separable_cbr_forward.2} parent=27 // pred_check
        %p1092 = pneg %p101
      $region30: #{se_separable_cbr_forward.2} parent=27 // pred_check_branch
        %1094 = sbr.rel (%p1092) target = $region32
      $region31: #{se_separable_cbr_forward.2} parent=27 // pred_region
        %s1095 = smul.u32 4, %s20
      $region32: #{se_separable_cbr_forward.2} parent=27 // pred_fallthru
        _
      // Predicated region
      $region33: #{se_separable_cbr_forward.2} parent=27 // pred_check
        %p1096 = pneg %p129
      $region34: #{se_separable_cbr_forward.2} parent=27 // pred_check_branch
        %1098 = sbr.rel (%p1096) target = $region36
      $region35: #{se_separable_cbr_forward.2} parent=27 // pred_region
        _
      $region36: #{se_separable_cbr_forward.2} parent=27 // pred_fallthru
        _
    $region28: #{se_separable_cbr_forward.2} parent=5 // pred_fallthru
      _
    %p1099 = scmp.le.s32.totalorder 2, %s10
    // Predicated region
    $region37: #{se_separable_cbr_forward.2} parent=5 // pred_check
      %p1100 = pneg %p1099
    $region38: #{se_separable_cbr_forward.2} parent=5 // pred_check_branch
      %1102 = sbr.rel (%p1100) target = $region40
    $region39: #{se_separable_cbr_forward.2} parent=5 // pred_region
      %s1103 = ssub.s32 %s10, 2
      // Predicated region
      $region41: #{se_separable_cbr_forward.2} parent=39 // pred_check
        %p1104 = pneg %p107
      $region42: #{se_separable_cbr_forward.2} parent=39 // pred_check_branch
        %1106 = sbr.rel (%p1104) target = $region44
      $region43: #{se_separable_cbr_forward.2} parent=39 // pred_region
        %s1107 = smul.u32 4, %s22
        %p1108 = scmp.lt.s32.totalorder %s21, 1
        %s1109 = scalar_select %p1108, %s21, 1
        %p1110 = scmp.lt.s32.totalorder %s1107, 3
        %s1111 = scalar_select %p1110, %s1107, 3
        %s1112 = smul.addr %s1111, 2
        %s1113 = smul.addr %s1109, 8
        %s1114 = sadd.s32 %s1112, %s1113
        %s1115 = smul.addr %s1114, 8
        %s1116 = scalar_lea.vmem %s2, %s1115
      $region44: #{se_separable_cbr_forward.2} parent=39 // pred_fallthru
        _
      // Predicated region
      $region45: #{se_separable_cbr_forward.2} parent=39 // pred_check
        %p1117 = pneg %p135
      $region46: #{se_separable_cbr_forward.2} parent=39 // pred_check_branch
        %1119 = sbr.rel (%p1117) target = $region48
      $region47: #{se_separable_cbr_forward.2} parent=39 // pred_region
        %p1120 = scmp.lt.s32.totalorder %s21, 1
        %s1121 = scalar_select %p1120, %s21, 1
        %p1122 = scmp.lt.s32.totalorder %s22, 0
        %s1123 = scalar_select %p1122, %s22, 0
        %s1124 = sadd.s32 %s1123, %s1121
        %s1125 = smul.addr %s1124, 4
        %s1126 = scalar_lea.vmem %s3, %s1125
      $region48: #{se_separable_cbr_forward.2} parent=39 // pred_fallthru
        _
    $region40: #{se_separable_cbr_forward.2} parent=5 // pred_fallthru
      _
  $region6: #{se_separable_cbr_forward.2} parent=0 // loop_footer
    %s14 = sadd.s32 1, %s10
  $region7: #{se_separable_cbr_forward.2} parent=0 // loop_footer_branch
    %9 = sbr.rel target = $region3
  $region8: #{se_separable_cbr_forward.2} parent=0 // loop_exit
    _

</llo_original>
